<compile_context>
chip_gen: v7x
topology: tpu7x:2x2x1
jax: 0.10.0
libtpu: 0.0.40
codegen_flags: <defaults>
</compile_context>

<pallas_src>
import math

import jax
import jax.numpy as jnp
from jax import lax
from jax.experimental import pallas as pl
from jax.experimental.pallas import tpu as pltpu

# --------------------------------------------------------------------------
# ResNet-50 backbone (plain JAX "glue", bf16). BatchNorm uses PyTorch default
# eval-mode stats (weight=1, bias=0, mean=0, var=1), i.e. y = x / sqrt(1+eps),
# which is a constant scale folded into the conv weights below.
# --------------------------------------------------------------------------
_BN_EPS = 1e-5
_BN_SCALE = 1.0 / math.sqrt(1.0 + _BN_EPS)
_RESNET50_CFG = [(3, 64, 1), (4, 128, 2), (6, 256, 2), (3, 512, 2)]


def _conv(x, w, stride=1, padding=0):
    return lax.conv_general_dilated(
        x, w, window_strides=(stride, stride),
        padding=[(padding, padding), (padding, padding)],
        dimension_numbers=("NCHW", "OIHW", "NCHW"))


def _maxpool(x):
    return lax.reduce_window(
        x, jnp.array(-jnp.inf, x.dtype), lax.max,
        window_dimensions=(1, 1, 3, 3), window_strides=(1, 1, 2, 2),
        padding=[(0, 0), (0, 0), (1, 1), (1, 1)])


def _he_folded(key, shape):
    """He init with the eval-mode BN scale folded in, cast to bf16."""
    fan_in = shape[1] * shape[2] * shape[3]
    w = jax.random.normal(key, shape, jnp.float32) * math.sqrt(2.0 / fan_in)
    return (w * _BN_SCALE).astype(jnp.bfloat16)


def make_resnet50_params(key):
    keys = iter(jax.random.split(key, 64))
    params = {"stem": _he_folded(next(keys), (64, 3, 7, 7)), "blocks": []}
    in_ch = 64
    for n_blocks, mid, _ in _RESNET50_CFG:
        for b in range(n_blocks):
            blk = {
                "w1": _he_folded(next(keys), (mid, in_ch, 1, 1)),
                "w2": _he_folded(next(keys), (mid, mid, 3, 3)),
                "w3": _he_folded(next(keys), (mid * 4, mid, 1, 1)),
            }
            if b == 0:  # downsample / projection shortcut
                blk["wd"] = _he_folded(next(keys), (mid * 4, in_ch, 1, 1))
            params["blocks"].append(blk)
            in_ch = mid * 4
    return params


def _bottleneck(x, blk, stride):
    identity = x
    out = jax.nn.relu(_conv(x, blk["w1"]))                       # BN folded
    out = jax.nn.relu(_conv(out, blk["w2"], stride=stride, padding=1))
    out = _conv(out, blk["w3"])
    if "wd" in blk:
        identity = _conv(x, blk["wd"], stride=stride)
    return jax.nn.relu(out + identity)


def resnet50_features(x, params):
    x = x.astype(jnp.bfloat16)
    x = jax.nn.relu(_conv(x, params["stem"], stride=2, padding=3))
    x = _maxpool(x)
    blk_iter = iter(params["blocks"])
    for n_blocks, _, stride in _RESNET50_CFG:
        for b in range(n_blocks):
            x = _bottleneck(x, next(blk_iter), stride if b == 0 else 1)
    return x  # (B, 2048, H/32, W/32), bf16


# --------------------------------------------------------------------------
# Fused Pallas head kernel.
#   Inputs (batch folded into the lane dimension, BS = B*64):
#     X    : (2048, BS)  bf16   activations, grid-invariant (resident)
#     W    : (144, 2048) bf16   1x1 Conv2d(2048->144) weight, row-tiled
#     weff : (144, BS)   f32    collapsed LocallyConnected2d map, row-tiled
#     beff : (144, BS)   f32    conv bias pre-multiplied by weff, row-tiled
#   Output: (144, BS) f32  =  (W @ X) * weff + beff  =  (W @ X + b) * weff
# Grid = (144 / 72,) "parallel" row blocks so both v7x TensorCores get work.
# --------------------------------------------------------------------------
def _head_kernel(x_ref, w_ref, weff_ref, beff_ref, o_ref):
    y = jnp.dot(w_ref[...], x_ref[...],
                preferred_element_type=jnp.float32)        # (72, BS) f32 on MXU
    o_ref[...] = y * weff_ref[...] + beff_ref[...]         # single FMA epilogue


def latent_head(x2d, w, weff_t, beff_t, *, row_block=72):
    """x2d:(2048,B*64) bf16 -> (144,B*64) f32 fused conv1x1+bias+localconv map."""
    C, BS = x2d.shape
    N = w.shape[0]
    assert N % row_block == 0
    return pl.pallas_call(
        _head_kernel,
        out_shape=jax.ShapeDtypeStruct((N, BS), jnp.float32),
        grid=(N // row_block,),
        in_specs=[
            # Activations: constant block index -> DMA'd once, resident.
            pl.BlockSpec((C, BS), lambda r: (0, 0)),
            # Row-tiled conv weight and collapsed localconv maps.
            pl.BlockSpec((row_block, C), lambda r: (r, 0)),
            pl.BlockSpec((row_block, BS), lambda r: (r, 0)),
            pl.BlockSpec((row_block, BS), lambda r: (r, 0)),
        ],
        out_specs=pl.BlockSpec((row_block, BS), lambda r: (r, 0)),
        compiler_params=pltpu.CompilerParams(
            dimension_semantics=("parallel",)),
    )(x2d, w, weff_t, beff_t)


# --------------------------------------------------------------------------
# Full ImageToLatent forward.
# (self.activation = ELU() is defined but never used in the torch forward.)
# --------------------------------------------------------------------------
def image_to_latent_forward(image, params):
    feats = resnet50_features(image, params["resnet"])        # (B, 2048, 8, 8) bf16
    B = feats.shape[0]
    # Fold batch into the lane/N dimension: (B,2048,64) -> (2048, B*64).
    x2d = feats.reshape(B, 2048, 64).transpose(1, 0, 2).reshape(2048, B * 64)
    # Tile the (144,64) per-batch maps across the folded batch columns.
    weff_t = jnp.tile(params["weff"], (1, B))                 # (144, B*64) f32
    beff_t = jnp.tile(params["beff"], (1, B))                 # (144, B*64) f32
    z = latent_head(x2d, params["conv_w"], weff_t, beff_t)    # (144, B*64) f32
    # Collapsed localconv chain: out = ((conv + b) * w_eff).T per batch; only
    # the tiny (96,96) H<->W swap + batch un-fold remain (XLA fuses them).
    z = z.reshape(144, B, 64).transpose(1, 0, 2).reshape(B, 96, 96)
    out = jnp.swapaxes(z, -1, -2)
    return out.reshape(B, 18, 512)                            # x.view(-1, 18, 512)


def make_params(key):
    k_res, k_cw, k_cb, k_lw = jax.random.split(key, 4)
    conv_w = jax.random.normal(k_cw, (144, 2048), jnp.float32) / math.sqrt(2048.0)
    conv_b = 0.01 * jax.random.normal(k_cb, (144, 1), jnp.float32)
    # LocallyConnected2d weight: torch.randn(1, 1, 1, 96, 96, 1) -> (96, 96).
    local_w = jax.random.normal(k_lw, (96, 96), jnp.float32)
    # Exact algebraic collapse of (mul, HW-swap) x3 + mul:
    #   out = x.T * (w.T*w*w.T*w) = x.T * (w*w.T)**2, and (w*w.T)**2 is
    #   symmetric, so out = (x * w_eff).T with w_eff viewed in the same
    #   channel-major (144, 64) flat layout as the 1x1-conv output.
    w_eff = ((local_w * local_w.T) ** 2).reshape(144, 64)     # (144, 64) f32
    b_eff = conv_b * w_eff                                    # bias folded in
    return {
        "resnet": make_resnet50_params(k_res),
        "conv_w": conv_w.astype(jnp.bfloat16),   # (144, 2048) bf16 for the MXU
        "weff": w_eff,                           # (144, 64) f32
        "beff": b_eff,                           # (144, 64) f32
    }


if __name__ == "__main__":
    key = jax.random.PRNGKey(0)
    k_params, k_img = jax.random.split(key)
    params = make_params(k_params)
    # Batch kept small; spatial must be 256 so the ResNet-50 feature map is
    # (2048, 8, 8) and the 144*8*8 -> 1*96*96 view in the module is valid.
    image = jax.random.normal(k_img, (2, 3, 256, 256), jnp.float32)

    fwd = jax.jit(image_to_latent_forward)
    out = fwd(image, params)
    jax.block_until_ready(out)
    assert out.shape == (2, 18, 512), out.shape
    assert out.dtype == jnp.float32
    print("KERNEL_OK")
</pallas_src>

<mosaic_0001>
module attributes {stable_mosaic.version = 11 : i64} {
  func.func @_head_kernel(%arg0: i32, %arg1: memref<2048x128xbf16, #tpu.memory_space<vmem>>, %arg2: memref<72x2048xbf16, #tpu.memory_space<vmem>>, %arg3: memref<72x128xf32, #tpu.memory_space<vmem>>, %arg4: memref<72x128xf32, #tpu.memory_space<vmem>>, %arg5: memref<72x128xf32, #tpu.memory_space<vmem>>) attributes {dimension_semantics = [#tpu.dimension_semantics<parallel>], iteration_bounds = array<i64: 2>, scalar_prefetch = 0 : i64, scratch_operands = 0 : i64, tpu.core_type = #tpu.core_type<tc>, window_params = [{pipeline_mode = #tpu.pipeline_mode<synchronous>, transform_indices = @transform_0, window_bounds = array<i64: 2048, 128>}, {transform_indices = @transform_1, window_bounds = array<i64: 72, 2048>}, {transform_indices = @transform_2, window_bounds = array<i64: 72, 128>}, {transform_indices = @transform_3, window_bounds = array<i64: 72, 128>}, {transform_indices = @transform_4, window_bounds = array<i64: 72, 128>}]} {
    %c0 = arith.constant 0 : index
    %c0_0 = arith.constant 0 : index
    %0 = vector.load %arg2[%c0, %c0_0] : memref<72x2048xbf16, #tpu.memory_space<vmem>>, vector<72x2048xbf16>
    %c0_1 = arith.constant 0 : index
    %c0_2 = arith.constant 0 : index
    %1 = vector.load %arg1[%c0_1, %c0_2] : memref<2048x128xbf16, #tpu.memory_space<vmem>>, vector<2048x128xbf16>
    %cst = arith.constant dense<0.000000e+00> : vector<72x128xf32>
    %2 = tpu.matmul %0, %1, %cst {dimension_numbers = #tpu.dot_dimension_numbers<[1], [0], [0], [1], [0, 0, 1, 1], [], []>} : vector<72x2048xbf16>, vector<2048x128xbf16>, vector<72x128xf32> -> vector<72x128xf32>
    %c0_3 = arith.constant 0 : index
    %c0_4 = arith.constant 0 : index
    %3 = vector.load %arg3[%c0_3, %c0_4] : memref<72x128xf32, #tpu.memory_space<vmem>>, vector<72x128xf32>
    %4 = arith.mulf %2, %3 : vector<72x128xf32>
    %c0_5 = arith.constant 0 : index
    %c0_6 = arith.constant 0 : index
    %5 = vector.load %arg4[%c0_5, %c0_6] : memref<72x128xf32, #tpu.memory_space<vmem>>, vector<72x128xf32>
    %6 = arith.addf %4, %5 : vector<72x128xf32>
    %c0_7 = arith.constant 0 : index
    %c0_8 = arith.constant 0 : index
    %7 = vector.load %arg5[%c0_7, %c0_8] : memref<72x128xf32, #tpu.memory_space<vmem>>, vector<72x128xf32>
    tpu.vector_store %arg5[%c0_7, %c0_8], %6 {strides = array<i32>} : memref<72x128xf32, #tpu.memory_space<vmem>>, vector<72x128xf32>,
    return
  }
  func.func @transform_0(%arg0: i32) -> (i32, i32) {
    %c0_i32 = arith.constant 0 : i32
    %c0_i32_0 = arith.constant 0 : i32
    %c0_i32_1 = arith.constant 0 : i32
    return %c0_i32, %c0_i32_0 : i32, i32
  }
  func.func @transform_1(%arg0: i32) -> (i32, i32) {
    %c0_i32 = arith.constant 0 : i32
    %c0_i32_0 = arith.constant 0 : i32
    return %arg0, %c0_i32 : i32, i32
  }
  func.func @transform_2(%arg0: i32) -> (i32, i32) {
    %c0_i32 = arith.constant 0 : i32
    %c0_i32_0 = arith.constant 0 : i32
    return %arg0, %c0_i32 : i32, i32
  }
  func.func @transform_3(%arg0: i32) -> (i32, i32) {
    %c0_i32 = arith.constant 0 : i32
    %c0_i32_0 = arith.constant 0 : i32
    return %arg0, %c0_i32 : i32, i32
  }
  func.func @transform_4(%arg0: i32) -> (i32, i32) {
    %c0_i32 = arith.constant 0 : i32
    %c0_i32_0 = arith.constant 0 : i32
    return %arg0, %c0_i32 : i32, i32
  }
}

</mosaic_0001>

<llo_original>
// kernel: tile.14
$region0: #{tile.14}
  %s0 = inlined_call_operand.vmem [shape: f32[144,2,64], index: 0, kind: input, shape index: {}]
  %s1 = inlined_call_operand.vmem [shape: f32[144,128], index: 1, kind: output, shape index: {}]
  $region1: #{tile.14} parent=0
    #allocation0 [shape = 'u8[589824]{0}', space=vmem, size = 0x90000, scoped, tag = 'scoped mem for input reshape']
    %s3 = sshllo.u32 0, 2
    %s4 = smul.addr 2, 143
    %s5 = scalar_lea.vmem %s0, %s4
    %v6 = vld [vmem:[%s5] sm:%s3]
    %s7 = scalar_lea.vmem [#allocation0], 1144
    %8 = vst [vmem:[%s7] sm:%s3] %v6
    %s9 = smul.addr 2, 142
    %s10 = scalar_lea.vmem %s0, %s9
    %v11 = vld [vmem:[%s10] sm:%s3]
    %s12 = scalar_lea.vmem [#allocation0], 1136
    %13 = vst [vmem:[%s12] sm:%s3] %v11
    %s14 = smul.addr 2, 141
    %s15 = scalar_lea.vmem %s0, %s14
    %v16 = vld [vmem:[%s15] sm:%s3]
    %s17 = scalar_lea.vmem [#allocation0], 1128
    %18 = vst [vmem:[%s17] sm:%s3] %v16
    %s19 = smul.addr 2, 140
    %s20 = scalar_lea.vmem %s0, %s19
    %v21 = vld [vmem:[%s20] sm:%s3]
    %s22 = scalar_lea.vmem [#allocation0], 1120
    %23 = vst [vmem:[%s22] sm:%s3] %v21
    %s24 = smul.addr 2, 139
    %s25 = scalar_lea.vmem %s0, %s24
    %v26 = vld [vmem:[%s25] sm:%s3]
    %s27 = scalar_lea.vmem [#allocation0], 1112
    %28 = vst [vmem:[%s27] sm:%s3] %v26
    %s29 = smul.addr 2, 138
    %s30 = scalar_lea.vmem %s0, %s29
    %v31 = vld [vmem:[%s30] sm:%s3]
    %s32 = scalar_lea.vmem [#allocation0], 1104
    %33 = vst [vmem:[%s32] sm:%s3] %v31
    %s34 = smul.addr 2, 137
    %s35 = scalar_lea.vmem %s0, %s34
    %v36 = vld [vmem:[%s35] sm:%s3]
    %s37 = scalar_lea.vmem [#allocation0], 1096
    %38 = vst [vmem:[%s37] sm:%s3] %v36
    %s39 = smul.addr 2, 136
    %s40 = scalar_lea.vmem %s0, %s39
    %v41 = vld [vmem:[%s40] sm:%s3]
    %s42 = scalar_lea.vmem [#allocation0], 1088
    %43 = vst [vmem:[%s42] sm:%s3] %v41
    %s44 = smul.addr 2, 135
    %s45 = scalar_lea.vmem %s0, %s44
    %v46 = vld [vmem:[%s45] sm:%s3]
    %s47 = scalar_lea.vmem [#allocation0], 1080
    %48 = vst [vmem:[%s47] sm:%s3] %v46
    %s49 = smul.addr 2, 134
    %s50 = scalar_lea.vmem %s0, %s49
    %v51 = vld [vmem:[%s50] sm:%s3]
    %s52 = scalar_lea.vmem [#allocation0], 1072
    %53 = vst [vmem:[%s52] sm:%s3] %v51
    %s54 = smul.addr 2, 133
    %s55 = scalar_lea.vmem %s0, %s54
    %v56 = vld [vmem:[%s55] sm:%s3]
    %s57 = scalar_lea.vmem [#allocation0], 1064
    %58 = vst [vmem:[%s57] sm:%s3] %v56
    %s59 = smul.addr 2, 132
    %s60 = scalar_lea.vmem %s0, %s59
    %v61 = vld [vmem:[%s60] sm:%s3]
    %s62 = scalar_lea.vmem [#allocation0], 1056
    %63 = vst [vmem:[%s62] sm:%s3] %v61
    %s64 = smul.addr 2, 131
    %s65 = scalar_lea.vmem %s0, %s64
    %v66 = vld [vmem:[%s65] sm:%s3]
    %s67 = scalar_lea.vmem [#allocation0], 1048
    %68 = vst [vmem:[%s67] sm:%s3] %v66
    %s69 = smul.addr 2, 130
    %s70 = scalar_lea.vmem %s0, %s69
    %v71 = vld [vmem:[%s70] sm:%s3]
    %s72 = scalar_lea.vmem [#allocation0], 1040
    %73 = vst [vmem:[%s72] sm:%s3] %v71
    %s74 = smul.addr 2, 129
    %s75 = scalar_lea.vmem %s0, %s74
    %v76 = vld [vmem:[%s75] sm:%s3]
    %s77 = scalar_lea.vmem [#allocation0], 1032
    %78 = vst [vmem:[%s77] sm:%s3] %v76
    %s79 = smul.addr 2, 128
    %s80 = scalar_lea.vmem %s0, %s79
    %v81 = vld [vmem:[%s80] sm:%s3]
    %s82 = scalar_lea.vmem [#allocation0], 1024
    %83 = vst [vmem:[%s82] sm:%s3] %v81
    %s84 = smul.addr 2, 127
    %s85 = scalar_lea.vmem %s0, %s84
    %v86 = vld [vmem:[%s85] sm:%s3]
    %s87 = scalar_lea.vmem [#allocation0], 1016
    %88 = vst [vmem:[%s87] sm:%s3] %v86
    %s89 = smul.addr 2, 126
    %s90 = scalar_lea.vmem %s0, %s89
    %v91 = vld [vmem:[%s90] sm:%s3]
    %s92 = scalar_lea.vmem [#allocation0], 1008
    %93 = vst [vmem:[%s92] sm:%s3] %v91
    %s94 = smul.addr 2, 125
    %s95 = scalar_lea.vmem %s0, %s94
    %v96 = vld [vmem:[%s95] sm:%s3]
    %s97 = scalar_lea.vmem [#allocation0], 1000
    %98 = vst [vmem:[%s97] sm:%s3] %v96
    %s99 = smul.addr 2, 124
    %s100 = scalar_lea.vmem %s0, %s99
    %v101 = vld [vmem:[%s100] sm:%s3]
    %s102 = scalar_lea.vmem [#allocation0], 992
    %103 = vst [vmem:[%s102] sm:%s3] %v101
    %s104 = smul.addr 2, 123
    %s105 = scalar_lea.vmem %s0, %s104
    %v106 = vld [vmem:[%s105] sm:%s3]
    %s107 = scalar_lea.vmem [#allocation0], 984
    %108 = vst [vmem:[%s107] sm:%s3] %v106
    %s109 = smul.addr 2, 122
    %s110 = scalar_lea.vmem %s0, %s109
    %v111 = vld [vmem:[%s110] sm:%s3]
    %s112 = scalar_lea.vmem [#allocation0], 976
    %113 = vst [vmem:[%s112] sm:%s3] %v111
    %s114 = smul.addr 2, 121
    %s115 = scalar_lea.vmem %s0, %s114
    %v116 = vld [vmem:[%s115] sm:%s3]
    %s117 = scalar_lea.vmem [#allocation0], 968
    %118 = vst [vmem:[%s117] sm:%s3] %v116
    %s119 = smul.addr 2, 120
    %s120 = scalar_lea.vmem %s0, %s119
    %v121 = vld [vmem:[%s120] sm:%s3]
    %s122 = scalar_lea.vmem [#allocation0], 960
    %123 = vst [vmem:[%s122] sm:%s3] %v121
    %s124 = smul.addr 2, 119
    %s125 = scalar_lea.vmem %s0, %s124
    %v126 = vld [vmem:[%s125] sm:%s3]
    %s127 = scalar_lea.vmem [#allocation0], 952
    %128 = vst [vmem:[%s127] sm:%s3] %v126
    %s129 = smul.addr 2, 118
    %s130 = scalar_lea.vmem %s0, %s129
    %v131 = vld [vmem:[%s130] sm:%s3]
    %s132 = scalar_lea.vmem [#allocation0], 944
    %133 = vst [vmem:[%s132] sm:%s3] %v131
    %s134 = smul.addr 2, 117
    %s135 = scalar_lea.vmem %s0, %s134
    %v136 = vld [vmem:[%s135] sm:%s3]
    %s137 = scalar_lea.vmem [#allocation0], 936
    %138 = vst [vmem:[%s137] sm:%s3] %v136
    %s139 = smul.addr 2, 116
    %s140 = scalar_lea.vmem %s0, %s139
    %v141 = vld [vmem:[%s140] sm:%s3]
    %s142 = scalar_lea.vmem [#allocation0], 928
    %143 = vst [vmem:[%s142] sm:%s3] %v141
    %s144 = smul.addr 2, 115
    %s145 = scalar_lea.vmem %s0, %s144
    %v146 = vld [vmem:[%s145] sm:%s3]
    %s147 = scalar_lea.vmem [#allocation0], 920
    %148 = vst [vmem:[%s147] sm:%s3] %v146
    %s149 = smul.addr 2, 114
    %s150 = scalar_lea.vmem %s0, %s149
    %v151 = vld [vmem:[%s150] sm:%s3]
    %s152 = scalar_lea.vmem [#allocation0], 912
    %153 = vst [vmem:[%s152] sm:%s3] %v151
    %s154 = smul.addr 2, 113
    %s155 = scalar_lea.vmem %s0, %s154
    %v156 = vld [vmem:[%s155] sm:%s3]
    %s157 = scalar_lea.vmem [#allocation0], 904
    %158 = vst [vmem:[%s157] sm:%s3] %v156
    %s159 = smul.addr 2, 112
    %s160 = scalar_lea.vmem %s0, %s159
    %v161 = vld [vmem:[%s160] sm:%s3]
    %s162 = scalar_lea.vmem [#allocation0], 896
    %163 = vst [vmem:[%s162] sm:%s3] %v161
    %s164 = smul.addr 2, 111
    %s165 = scalar_lea.vmem %s0, %s164
    %v166 = vld [vmem:[%s165] sm:%s3]
    %s167 = scalar_lea.vmem [#allocation0], 888
    %168 = vst [vmem:[%s167] sm:%s3] %v166
    %s169 = smul.addr 2, 110
    %s170 = scalar_lea.vmem %s0, %s169
    %v171 = vld [vmem:[%s170] sm:%s3]
    %s172 = scalar_lea.vmem [#allocation0], 880
    %173 = vst [vmem:[%s172] sm:%s3] %v171
    %s174 = smul.addr 2, 109
    %s175 = scalar_lea.vmem %s0, %s174
    %v176 = vld [vmem:[%s175] sm:%s3]
    %s177 = scalar_lea.vmem [#allocation0], 872
    %178 = vst [vmem:[%s177] sm:%s3] %v176
    %s179 = smul.addr 2, 108
    %s180 = scalar_lea.vmem %s0, %s179
    %v181 = vld [vmem:[%s180] sm:%s3]
    %s182 = scalar_lea.vmem [#allocation0], 864
    %183 = vst [vmem:[%s182] sm:%s3] %v181
    %s184 = smul.addr 2, 107
    %s185 = scalar_lea.vmem %s0, %s184
    %v186 = vld [vmem:[%s185] sm:%s3]
    %s187 = scalar_lea.vmem [#allocation0], 856
    %188 = vst [vmem:[%s187] sm:%s3] %v186
    %s189 = smul.addr 2, 106
    %s190 = scalar_lea.vmem %s0, %s189
    %v191 = vld [vmem:[%s190] sm:%s3]
    %s192 = scalar_lea.vmem [#allocation0], 848
    %193 = vst [vmem:[%s192] sm:%s3] %v191
    %s194 = smul.addr 2, 105
    %s195 = scalar_lea.vmem %s0, %s194
    %v196 = vld [vmem:[%s195] sm:%s3]
    %s197 = scalar_lea.vmem [#allocation0], 840
    %198 = vst [vmem:[%s197] sm:%s3] %v196
    %s199 = smul.addr 2, 104
    %s200 = scalar_lea.vmem %s0, %s199
    %v201 = vld [vmem:[%s200] sm:%s3]
    %s202 = scalar_lea.vmem [#allocation0], 832
    %203 = vst [vmem:[%s202] sm:%s3] %v201
    %s204 = smul.addr 2, 103
    %s205 = scalar_lea.vmem %s0, %s204
    %v206 = vld [vmem:[%s205] sm:%s3]
    %s207 = scalar_lea.vmem [#allocation0], 824
    %208 = vst [vmem:[%s207] sm:%s3] %v206
    %s209 = smul.addr 2, 102
    %s210 = scalar_lea.vmem %s0, %s209
    %v211 = vld [vmem:[%s210] sm:%s3]
    %s212 = scalar_lea.vmem [#allocation0], 816
    %213 = vst [vmem:[%s212] sm:%s3] %v211
    %s214 = smul.addr 2, 101
    %s215 = scalar_lea.vmem %s0, %s214
    %v216 = vld [vmem:[%s215] sm:%s3]
    %s217 = scalar_lea.vmem [#allocation0], 808
    %218 = vst [vmem:[%s217] sm:%s3] %v216
    %s219 = smul.addr 2, 100
    %s220 = scalar_lea.vmem %s0, %s219
    %v221 = vld [vmem:[%s220] sm:%s3]
    %s222 = scalar_lea.vmem [#allocation0], 800
    %223 = vst [vmem:[%s222] sm:%s3] %v221
    %s224 = smul.addr 2, 99
    %s225 = scalar_lea.vmem %s0, %s224
    %v226 = vld [vmem:[%s225] sm:%s3]
    %s227 = scalar_lea.vmem [#allocation0], 792
    %228 = vst [vmem:[%s227] sm:%s3] %v226
    %s229 = smul.addr 2, 98
    %s230 = scalar_lea.vmem %s0, %s229
    %v231 = vld [vmem:[%s230] sm:%s3]
    %s232 = scalar_lea.vmem [#allocation0], 784
    %233 = vst [vmem:[%s232] sm:%s3] %v231
    %s234 = smul.addr 2, 97
    %s235 = scalar_lea.vmem %s0, %s234
    %v236 = vld [vmem:[%s235] sm:%s3]
    %s237 = scalar_lea.vmem [#allocation0], 776
    %238 = vst [vmem:[%s237] sm:%s3] %v236
    %s239 = smul.addr 2, 96
    %s240 = scalar_lea.vmem %s0, %s239
    %v241 = vld [vmem:[%s240] sm:%s3]
    %s242 = scalar_lea.vmem [#allocation0], 768
    %243 = vst [vmem:[%s242] sm:%s3] %v241
    %s244 = smul.addr 2, 95
    %s245 = scalar_lea.vmem %s0, %s244
    %v246 = vld [vmem:[%s245] sm:%s3]
    %s247 = scalar_lea.vmem [#allocation0], 760
    %248 = vst [vmem:[%s247] sm:%s3] %v246
    %s249 = smul.addr 2, 94
    %s250 = scalar_lea.vmem %s0, %s249
    %v251 = vld [vmem:[%s250] sm:%s3]
    %s252 = scalar_lea.vmem [#allocation0], 752
    %253 = vst [vmem:[%s252] sm:%s3] %v251
    %s254 = smul.addr 2, 93
    %s255 = scalar_lea.vmem %s0, %s254
    %v256 = vld [vmem:[%s255] sm:%s3]
    %s257 = scalar_lea.vmem [#allocation0], 744
    %258 = vst [vmem:[%s257] sm:%s3] %v256
    %s259 = smul.addr 2, 92
    %s260 = scalar_lea.vmem %s0, %s259
    %v261 = vld [vmem:[%s260] sm:%s3]
    %s262 = scalar_lea.vmem [#allocation0], 736
    %263 = vst [vmem:[%s262] sm:%s3] %v261
    %s264 = smul.addr 2, 91
    %s265 = scalar_lea.vmem %s0, %s264
    %v266 = vld [vmem:[%s265] sm:%s3]
    %s267 = scalar_lea.vmem [#allocation0], 728
    %268 = vst [vmem:[%s267] sm:%s3] %v266
    %s269 = smul.addr 2, 90
    %s270 = scalar_lea.vmem %s0, %s269
    %v271 = vld [vmem:[%s270] sm:%s3]
    %s272 = scalar_lea.vmem [#allocation0], 720
    %273 = vst [vmem:[%s272] sm:%s3] %v271
    %s274 = smul.addr 2, 89
    %s275 = scalar_lea.vmem %s0, %s274
    %v276 = vld [vmem:[%s275] sm:%s3]
    %s277 = scalar_lea.vmem [#allocation0], 712
    %278 = vst [vmem:[%s277] sm:%s3] %v276
    %s279 = smul.addr 2, 88
    %s280 = scalar_lea.vmem %s0, %s279
    %v281 = vld [vmem:[%s280] sm:%s3]
    %s282 = scalar_lea.vmem [#allocation0], 704
    %283 = vst [vmem:[%s282] sm:%s3] %v281
    %s284 = smul.addr 2, 87
    %s285 = scalar_lea.vmem %s0, %s284
    %v286 = vld [vmem:[%s285] sm:%s3]
    %s287 = scalar_lea.vmem [#allocation0], 696
    %288 = vst [vmem:[%s287] sm:%s3] %v286
    %s289 = smul.addr 2, 86
    %s290 = scalar_lea.vmem %s0, %s289
    %v291 = vld [vmem:[%s290] sm:%s3]
    %s292 = scalar_lea.vmem [#allocation0], 688
    %293 = vst [vmem:[%s292] sm:%s3] %v291
    %s294 = smul.addr 2, 85
    %s295 = scalar_lea.vmem %s0, %s294
    %v296 = vld [vmem:[%s295] sm:%s3]
    %s297 = scalar_lea.vmem [#allocation0], 680
    %298 = vst [vmem:[%s297] sm:%s3] %v296
    %s299 = smul.addr 2, 84
    %s300 = scalar_lea.vmem %s0, %s299
    %v301 = vld [vmem:[%s300] sm:%s3]
    %s302 = scalar_lea.vmem [#allocation0], 672
    %303 = vst [vmem:[%s302] sm:%s3] %v301
    %s304 = smul.addr 2, 83
    %s305 = scalar_lea.vmem %s0, %s304
    %v306 = vld [vmem:[%s305] sm:%s3]
    %s307 = scalar_lea.vmem [#allocation0], 664
    %308 = vst [vmem:[%s307] sm:%s3] %v306
    %s309 = smul.addr 2, 82
    %s310 = scalar_lea.vmem %s0, %s309
    %v311 = vld [vmem:[%s310] sm:%s3]
    %s312 = scalar_lea.vmem [#allocation0], 656
    %313 = vst [vmem:[%s312] sm:%s3] %v311
    %s314 = smul.addr 2, 81
    %s315 = scalar_lea.vmem %s0, %s314
    %v316 = vld [vmem:[%s315] sm:%s3]
    %s317 = scalar_lea.vmem [#allocation0], 648
    %318 = vst [vmem:[%s317] sm:%s3] %v316
    %s319 = smul.addr 2, 80
    %s320 = scalar_lea.vmem %s0, %s319
    %v321 = vld [vmem:[%s320] sm:%s3]
    %s322 = scalar_lea.vmem [#allocation0], 640
    %323 = vst [vmem:[%s322] sm:%s3] %v321
    %s324 = smul.addr 2, 79
    %s325 = scalar_lea.vmem %s0, %s324
    %v326 = vld [vmem:[%s325] sm:%s3]
    %s327 = scalar_lea.vmem [#allocation0], 632
    %328 = vst [vmem:[%s327] sm:%s3] %v326
    %s329 = smul.addr 2, 78
    %s330 = scalar_lea.vmem %s0, %s329
    %v331 = vld [vmem:[%s330] sm:%s3]
    %s332 = scalar_lea.vmem [#allocation0], 624
    %333 = vst [vmem:[%s332] sm:%s3] %v331
    %s334 = smul.addr 2, 77
    %s335 = scalar_lea.vmem %s0, %s334
    %v336 = vld [vmem:[%s335] sm:%s3]
    %s337 = scalar_lea.vmem [#allocation0], 616
    %338 = vst [vmem:[%s337] sm:%s3] %v336
    %s339 = smul.addr 2, 76
    %s340 = scalar_lea.vmem %s0, %s339
    %v341 = vld [vmem:[%s340] sm:%s3]
    %s342 = scalar_lea.vmem [#allocation0], 608
    %343 = vst [vmem:[%s342] sm:%s3] %v341
    %s344 = smul.addr 2, 75
    %s345 = scalar_lea.vmem %s0, %s344
    %v346 = vld [vmem:[%s345] sm:%s3]
    %s347 = scalar_lea.vmem [#allocation0], 600
    %348 = vst [vmem:[%s347] sm:%s3] %v346
    %s349 = smul.addr 2, 74
    %s350 = scalar_lea.vmem %s0, %s349
    %v351 = vld [vmem:[%s350] sm:%s3]
    %s352 = scalar_lea.vmem [#allocation0], 592
    %353 = vst [vmem:[%s352] sm:%s3] %v351
    %s354 = smul.addr 2, 73
    %s355 = scalar_lea.vmem %s0, %s354
    %v356 = vld [vmem:[%s355] sm:%s3]
    %s357 = scalar_lea.vmem [#allocation0], 584
    %358 = vst [vmem:[%s357] sm:%s3] %v356
    %s359 = smul.addr 2, 72
    %s360 = scalar_lea.vmem %s0, %s359
    %v361 = vld [vmem:[%s360] sm:%s3]
    %s362 = scalar_lea.vmem [#allocation0], 576
    %363 = vst [vmem:[%s362] sm:%s3] %v361
    %s364 = smul.addr 2, 71
    %s365 = scalar_lea.vmem %s0, %s364
    %v366 = vld [vmem:[%s365] sm:%s3]
    %s367 = scalar_lea.vmem [#allocation0], 568
    %368 = vst [vmem:[%s367] sm:%s3] %v366
    %s369 = smul.addr 2, 70
    %s370 = scalar_lea.vmem %s0, %s369
    %v371 = vld [vmem:[%s370] sm:%s3]
    %s372 = scalar_lea.vmem [#allocation0], 560
    %373 = vst [vmem:[%s372] sm:%s3] %v371
    %s374 = smul.addr 2, 69
    %s375 = scalar_lea.vmem %s0, %s374
    %v376 = vld [vmem:[%s375] sm:%s3]
    %s377 = scalar_lea.vmem [#allocation0], 552
    %378 = vst [vmem:[%s377] sm:%s3] %v376
    %s379 = smul.addr 2, 68
    %s380 = scalar_lea.vmem %s0, %s379
    %v381 = vld [vmem:[%s380] sm:%s3]
    %s382 = scalar_lea.vmem [#allocation0], 544
    %383 = vst [vmem:[%s382] sm:%s3] %v381
    %s384 = smul.addr 2, 67
    %s385 = scalar_lea.vmem %s0, %s384
    %v386 = vld [vmem:[%s385] sm:%s3]
    %s387 = scalar_lea.vmem [#allocation0], 536
    %388 = vst [vmem:[%s387] sm:%s3] %v386
    %s389 = smul.addr 2, 66
    %s390 = scalar_lea.vmem %s0, %s389
    %v391 = vld [vmem:[%s390] sm:%s3]
    %s392 = scalar_lea.vmem [#allocation0], 528
    %393 = vst [vmem:[%s392] sm:%s3] %v391
    %s394 = smul.addr 2, 65
    %s395 = scalar_lea.vmem %s0, %s394
    %v396 = vld [vmem:[%s395] sm:%s3]
    %s397 = scalar_lea.vmem [#allocation0], 520
    %398 = vst [vmem:[%s397] sm:%s3] %v396
    %s399 = smul.addr 2, 64
    %s400 = scalar_lea.vmem %s0, %s399
    %v401 = vld [vmem:[%s400] sm:%s3]
    %s402 = scalar_lea.vmem [#allocation0], 512
    %403 = vst [vmem:[%s402] sm:%s3] %v401
    %s404 = smul.addr 2, 63
    %s405 = scalar_lea.vmem %s0, %s404
    %v406 = vld [vmem:[%s405] sm:%s3]
    %s407 = scalar_lea.vmem [#allocation0], 504
    %408 = vst [vmem:[%s407] sm:%s3] %v406
    %s409 = smul.addr 2, 62
    %s410 = scalar_lea.vmem %s0, %s409
    %v411 = vld [vmem:[%s410] sm:%s3]
    %s412 = scalar_lea.vmem [#allocation0], 496
    %413 = vst [vmem:[%s412] sm:%s3] %v411
    %s414 = smul.addr 2, 61
    %s415 = scalar_lea.vmem %s0, %s414
    %v416 = vld [vmem:[%s415] sm:%s3]
    %s417 = scalar_lea.vmem [#allocation0], 488
    %418 = vst [vmem:[%s417] sm:%s3] %v416
    %s419 = smul.addr 2, 60
    %s420 = scalar_lea.vmem %s0, %s419
    %v421 = vld [vmem:[%s420] sm:%s3]
    %s422 = scalar_lea.vmem [#allocation0], 480
    %423 = vst [vmem:[%s422] sm:%s3] %v421
    %s424 = smul.addr 2, 59
    %s425 = scalar_lea.vmem %s0, %s424
    %v426 = vld [vmem:[%s425] sm:%s3]
    %s427 = scalar_lea.vmem [#allocation0], 472
    %428 = vst [vmem:[%s427] sm:%s3] %v426
    %s429 = smul.addr 2, 58
    %s430 = scalar_lea.vmem %s0, %s429
    %v431 = vld [vmem:[%s430] sm:%s3]
    %s432 = scalar_lea.vmem [#allocation0], 464
    %433 = vst [vmem:[%s432] sm:%s3] %v431
    %s434 = smul.addr 2, 57
    %s435 = scalar_lea.vmem %s0, %s434
    %v436 = vld [vmem:[%s435] sm:%s3]
    %s437 = scalar_lea.vmem [#allocation0], 456
    %438 = vst [vmem:[%s437] sm:%s3] %v436
    %s439 = smul.addr 2, 56
    %s440 = scalar_lea.vmem %s0, %s439
    %v441 = vld [vmem:[%s440] sm:%s3]
    %s442 = scalar_lea.vmem [#allocation0], 448
    %443 = vst [vmem:[%s442] sm:%s3] %v441
    %s444 = smul.addr 2, 55
    %s445 = scalar_lea.vmem %s0, %s444
    %v446 = vld [vmem:[%s445] sm:%s3]
    %s447 = scalar_lea.vmem [#allocation0], 440
    %448 = vst [vmem:[%s447] sm:%s3] %v446
    %s449 = smul.addr 2, 54
    %s450 = scalar_lea.vmem %s0, %s449
    %v451 = vld [vmem:[%s450] sm:%s3]
    %s452 = scalar_lea.vmem [#allocation0], 432
    %453 = vst [vmem:[%s452] sm:%s3] %v451
    %s454 = smul.addr 2, 53
    %s455 = scalar_lea.vmem %s0, %s454
    %v456 = vld [vmem:[%s455] sm:%s3]
    %s457 = scalar_lea.vmem [#allocation0], 424
    %458 = vst [vmem:[%s457] sm:%s3] %v456
    %s459 = smul.addr 2, 52
    %s460 = scalar_lea.vmem %s0, %s459
    %v461 = vld [vmem:[%s460] sm:%s3]
    %s462 = scalar_lea.vmem [#allocation0], 416
    %463 = vst [vmem:[%s462] sm:%s3] %v461
    %s464 = smul.addr 2, 51
    %s465 = scalar_lea.vmem %s0, %s464
    %v466 = vld [vmem:[%s465] sm:%s3]
    %s467 = scalar_lea.vmem [#allocation0], 408
    %468 = vst [vmem:[%s467] sm:%s3] %v466
    %s469 = smul.addr 2, 50
    %s470 = scalar_lea.vmem %s0, %s469
    %v471 = vld [vmem:[%s470] sm:%s3]
    %s472 = scalar_lea.vmem [#allocation0], 400
    %473 = vst [vmem:[%s472] sm:%s3] %v471
    %s474 = smul.addr 2, 49
    %s475 = scalar_lea.vmem %s0, %s474
    %v476 = vld [vmem:[%s475] sm:%s3]
    %s477 = scalar_lea.vmem [#allocation0], 392
    %478 = vst [vmem:[%s477] sm:%s3] %v476
    %s479 = smul.addr 2, 48
    %s480 = scalar_lea.vmem %s0, %s479
    %v481 = vld [vmem:[%s480] sm:%s3]
    %s482 = scalar_lea.vmem [#allocation0], 384
    %483 = vst [vmem:[%s482] sm:%s3] %v481
    %s484 = smul.addr 2, 47
    %s485 = scalar_lea.vmem %s0, %s484
    %v486 = vld [vmem:[%s485] sm:%s3]
    %s487 = scalar_lea.vmem [#allocation0], 376
    %488 = vst [vmem:[%s487] sm:%s3] %v486
    %s489 = smul.addr 2, 46
    %s490 = scalar_lea.vmem %s0, %s489
    %v491 = vld [vmem:[%s490] sm:%s3]
    %s492 = scalar_lea.vmem [#allocation0], 368
    %493 = vst [vmem:[%s492] sm:%s3] %v491
    %s494 = smul.addr 2, 45
    %s495 = scalar_lea.vmem %s0, %s494
    %v496 = vld [vmem:[%s495] sm:%s3]
    %s497 = scalar_lea.vmem [#allocation0], 360
    %498 = vst [vmem:[%s497] sm:%s3] %v496
    %s499 = smul.addr 2, 44
    %s500 = scalar_lea.vmem %s0, %s499
    %v501 = vld [vmem:[%s500] sm:%s3]
    %s502 = scalar_lea.vmem [#allocation0], 352
    %503 = vst [vmem:[%s502] sm:%s3] %v501
    %s504 = smul.addr 2, 43
    %s505 = scalar_lea.vmem %s0, %s504
    %v506 = vld [vmem:[%s505] sm:%s3]
    %s507 = scalar_lea.vmem [#allocation0], 344
    %508 = vst [vmem:[%s507] sm:%s3] %v506
    %s509 = smul.addr 2, 42
    %s510 = scalar_lea.vmem %s0, %s509
    %v511 = vld [vmem:[%s510] sm:%s3]
    %s512 = scalar_lea.vmem [#allocation0], 336
    %513 = vst [vmem:[%s512] sm:%s3] %v511
    %s514 = smul.addr 2, 41
    %s515 = scalar_lea.vmem %s0, %s514
    %v516 = vld [vmem:[%s515] sm:%s3]
    %s517 = scalar_lea.vmem [#allocation0], 328
    %518 = vst [vmem:[%s517] sm:%s3] %v516
    %s519 = smul.addr 2, 40
    %s520 = scalar_lea.vmem %s0, %s519
    %v521 = vld [vmem:[%s520] sm:%s3]
    %s522 = scalar_lea.vmem [#allocation0], 320
    %523 = vst [vmem:[%s522] sm:%s3] %v521
    %s524 = smul.addr 2, 39
    %s525 = scalar_lea.vmem %s0, %s524
    %v526 = vld [vmem:[%s525] sm:%s3]
    %s527 = scalar_lea.vmem [#allocation0], 312
    %528 = vst [vmem:[%s527] sm:%s3] %v526
    %s529 = smul.addr 2, 38
    %s530 = scalar_lea.vmem %s0, %s529
    %v531 = vld [vmem:[%s530] sm:%s3]
    %s532 = scalar_lea.vmem [#allocation0], 304
    %533 = vst [vmem:[%s532] sm:%s3] %v531
    %s534 = smul.addr 2, 37
    %s535 = scalar_lea.vmem %s0, %s534
    %v536 = vld [vmem:[%s535] sm:%s3]
    %s537 = scalar_lea.vmem [#allocation0], 296
    %538 = vst [vmem:[%s537] sm:%s3] %v536
    %s539 = smul.addr 2, 36
    %s540 = scalar_lea.vmem %s0, %s539
    %v541 = vld [vmem:[%s540] sm:%s3]
    %s542 = scalar_lea.vmem [#allocation0], 288
    %543 = vst [vmem:[%s542] sm:%s3] %v541
    %s544 = smul.addr 2, 35
    %s545 = scalar_lea.vmem %s0, %s544
    %v546 = vld [vmem:[%s545] sm:%s3]
    %s547 = scalar_lea.vmem [#allocation0], 280
    %548 = vst [vmem:[%s547] sm:%s3] %v546
    %s549 = smul.addr 2, 34
    %s550 = scalar_lea.vmem %s0, %s549
    %v551 = vld [vmem:[%s550] sm:%s3]
    %s552 = scalar_lea.vmem [#allocation0], 272
    %553 = vst [vmem:[%s552] sm:%s3] %v551
    %s554 = smul.addr 2, 33
    %s555 = scalar_lea.vmem %s0, %s554
    %v556 = vld [vmem:[%s555] sm:%s3]
    %s557 = scalar_lea.vmem [#allocation0], 264
    %558 = vst [vmem:[%s557] sm:%s3] %v556
    %s559 = smul.addr 2, 32
    %s560 = scalar_lea.vmem %s0, %s559
    %v561 = vld [vmem:[%s560] sm:%s3]
    %s562 = scalar_lea.vmem [#allocation0], 256
    %563 = vst [vmem:[%s562] sm:%s3] %v561
    %s564 = smul.addr 2, 31
    %s565 = scalar_lea.vmem %s0, %s564
    %v566 = vld [vmem:[%s565] sm:%s3]
    %s567 = scalar_lea.vmem [#allocation0], 248
    %568 = vst [vmem:[%s567] sm:%s3] %v566
    %s569 = smul.addr 2, 30
    %s570 = scalar_lea.vmem %s0, %s569
    %v571 = vld [vmem:[%s570] sm:%s3]
    %s572 = scalar_lea.vmem [#allocation0], 240
    %573 = vst [vmem:[%s572] sm:%s3] %v571
    %s574 = smul.addr 2, 29
    %s575 = scalar_lea.vmem %s0, %s574
    %v576 = vld [vmem:[%s575] sm:%s3]
    %s577 = scalar_lea.vmem [#allocation0], 232
    %578 = vst [vmem:[%s577] sm:%s3] %v576
    %s579 = smul.addr 2, 28
    %s580 = scalar_lea.vmem %s0, %s579
    %v581 = vld [vmem:[%s580] sm:%s3]
    %s582 = scalar_lea.vmem [#allocation0], 224
    %583 = vst [vmem:[%s582] sm:%s3] %v581
    %s584 = smul.addr 2, 27
    %s585 = scalar_lea.vmem %s0, %s584
    %v586 = vld [vmem:[%s585] sm:%s3]
    %s587 = scalar_lea.vmem [#allocation0], 216
    %588 = vst [vmem:[%s587] sm:%s3] %v586
    %s589 = smul.addr 2, 26
    %s590 = scalar_lea.vmem %s0, %s589
    %v591 = vld [vmem:[%s590] sm:%s3]
    %s592 = scalar_lea.vmem [#allocation0], 208
    %593 = vst [vmem:[%s592] sm:%s3] %v591
    %s594 = smul.addr 2, 25
    %s595 = scalar_lea.vmem %s0, %s594
    %v596 = vld [vmem:[%s595] sm:%s3]
    %s597 = scalar_lea.vmem [#allocation0], 200
    %598 = vst [vmem:[%s597] sm:%s3] %v596
    %s599 = smul.addr 2, 24
    %s600 = scalar_lea.vmem %s0, %s599
    %v601 = vld [vmem:[%s600] sm:%s3]
    %s602 = scalar_lea.vmem [#allocation0], 192
    %603 = vst [vmem:[%s602] sm:%s3] %v601
    %s604 = smul.addr 2, 23
    %s605 = scalar_lea.vmem %s0, %s604
    %v606 = vld [vmem:[%s605] sm:%s3]
    %s607 = scalar_lea.vmem [#allocation0], 184
    %608 = vst [vmem:[%s607] sm:%s3] %v606
    %s609 = smul.addr 2, 22
    %s610 = scalar_lea.vmem %s0, %s609
    %v611 = vld [vmem:[%s610] sm:%s3]
    %s612 = scalar_lea.vmem [#allocation0], 176
    %613 = vst [vmem:[%s612] sm:%s3] %v611
    %s614 = smul.addr 2, 21
    %s615 = scalar_lea.vmem %s0, %s614
    %v616 = vld [vmem:[%s615] sm:%s3]
    %s617 = scalar_lea.vmem [#allocation0], 168
    %618 = vst [vmem:[%s617] sm:%s3] %v616
    %s619 = smul.addr 2, 20
    %s620 = scalar_lea.vmem %s0, %s619
    %v621 = vld [vmem:[%s620] sm:%s3]
    %s622 = scalar_lea.vmem [#allocation0], 160
    %623 = vst [vmem:[%s622] sm:%s3] %v621
    %s624 = smul.addr 2, 19
    %s625 = scalar_lea.vmem %s0, %s624
    %v626 = vld [vmem:[%s625] sm:%s3]
    %s627 = scalar_lea.vmem [#allocation0], 152
    %628 = vst [vmem:[%s627] sm:%s3] %v626
    %s629 = smul.addr 2, 18
    %s630 = scalar_lea.vmem %s0, %s629
    %v631 = vld [vmem:[%s630] sm:%s3]
    %s632 = scalar_lea.vmem [#allocation0], 144
    %633 = vst [vmem:[%s632] sm:%s3] %v631
    %s634 = smul.addr 2, 17
    %s635 = scalar_lea.vmem %s0, %s634
    %v636 = vld [vmem:[%s635] sm:%s3]
    %s637 = scalar_lea.vmem [#allocation0], 136
    %638 = vst [vmem:[%s637] sm:%s3] %v636
    %s639 = smul.addr 2, 16
    %s640 = scalar_lea.vmem %s0, %s639
    %v641 = vld [vmem:[%s640] sm:%s3]
    %s642 = scalar_lea.vmem [#allocation0], 128
    %643 = vst [vmem:[%s642] sm:%s3] %v641
    %s644 = smul.addr 2, 15
    %s645 = scalar_lea.vmem %s0, %s644
    %v646 = vld [vmem:[%s645] sm:%s3]
    %s647 = scalar_lea.vmem [#allocation0], 120
    %648 = vst [vmem:[%s647] sm:%s3] %v646
    %s649 = smul.addr 2, 14
    %s650 = scalar_lea.vmem %s0, %s649
    %v651 = vld [vmem:[%s650] sm:%s3]
    %s652 = scalar_lea.vmem [#allocation0], 112
    %653 = vst [vmem:[%s652] sm:%s3] %v651
    %s654 = smul.addr 2, 13
    %s655 = scalar_lea.vmem %s0, %s654
    %v656 = vld [vmem:[%s655] sm:%s3]
    %s657 = scalar_lea.vmem [#allocation0], 104
    %658 = vst [vmem:[%s657] sm:%s3] %v656
    %s659 = smul.addr 2, 12
    %s660 = scalar_lea.vmem %s0, %s659
    %v661 = vld [vmem:[%s660] sm:%s3]
    %s662 = scalar_lea.vmem [#allocation0], 96
    %663 = vst [vmem:[%s662] sm:%s3] %v661
    %s664 = smul.addr 2, 11
    %s665 = scalar_lea.vmem %s0, %s664
    %v666 = vld [vmem:[%s665] sm:%s3]
    %s667 = scalar_lea.vmem [#allocation0], 88
    %668 = vst [vmem:[%s667] sm:%s3] %v666
    %s669 = smul.addr 2, 10
    %s670 = scalar_lea.vmem %s0, %s669
    %v671 = vld [vmem:[%s670] sm:%s3]
    %s672 = scalar_lea.vmem [#allocation0], 80
    %673 = vst [vmem:[%s672] sm:%s3] %v671
    %s674 = smul.addr 2, 9
    %s675 = scalar_lea.vmem %s0, %s674
    %v676 = vld [vmem:[%s675] sm:%s3]
    %s677 = scalar_lea.vmem [#allocation0], 72
    %678 = vst [vmem:[%s677] sm:%s3] %v676
    %s679 = smul.addr 2, 8
    %s680 = scalar_lea.vmem %s0, %s679
    %v681 = vld [vmem:[%s680] sm:%s3]
    %s682 = scalar_lea.vmem [#allocation0], 64
    %683 = vst [vmem:[%s682] sm:%s3] %v681
    %s684 = smul.addr 2, 7
    %s685 = scalar_lea.vmem %s0, %s684
    %v686 = vld [vmem:[%s685] sm:%s3]
    %s687 = scalar_lea.vmem [#allocation0], 56
    %688 = vst [vmem:[%s687] sm:%s3] %v686
    %s689 = smul.addr 2, 6
    %s690 = scalar_lea.vmem %s0, %s689
    %v691 = vld [vmem:[%s690] sm:%s3]
    %s692 = scalar_lea.vmem [#allocation0], 48
    %693 = vst [vmem:[%s692] sm:%s3] %v691
    %s694 = smul.addr 2, 5
    %s695 = scalar_lea.vmem %s0, %s694
    %v696 = vld [vmem:[%s695] sm:%s3]
    %s697 = scalar_lea.vmem [#allocation0], 40
    %698 = vst [vmem:[%s697] sm:%s3] %v696
    %s699 = smul.addr 2, 4
    %s700 = scalar_lea.vmem %s0, %s699
    %v701 = vld [vmem:[%s700] sm:%s3]
    %s702 = scalar_lea.vmem [#allocation0], 32
    %703 = vst [vmem:[%s702] sm:%s3] %v701
    %s704 = smul.addr 2, 3
    %s705 = scalar_lea.vmem %s0, %s704
    %v706 = vld [vmem:[%s705] sm:%s3]
    %s707 = scalar_lea.vmem [#allocation0], 24
    %708 = vst [vmem:[%s707] sm:%s3] %v706
    %s709 = smul.addr 2, 2
    %s710 = scalar_lea.vmem %s0, %s709
    %v711 = vld [vmem:[%s710] sm:%s3]
    %s712 = scalar_lea.vmem [#allocation0], 16
    %713 = vst [vmem:[%s712] sm:%s3] %v711
    %s714 = scalar_lea.vmem %s0, 2
    %v715 = vld [vmem:[%s714] sm:%s3]
    %s716 = scalar_lea.vmem [#allocation0], 8
    %717 = vst [vmem:[%s716] sm:%s3] %v715
    %v718 = vld [vmem:[%s0] sm:%s3]
    %719 = vst [vmem:[#allocation0] sm:%s3] %v718
    %v720 = vld [vmem:[#allocation0] ss:$8 sm:$0xf]
    %v721 = vld [vmem:[#allocation0] ss:$8 sm:$0xf0]
    %vm722 = vcmask 1047556
    %v723 = vsel %vm722, %v721, %v720
    %vm724 = vcmask 523264
    %725 = vst.msk [vmem:[%s1] sm:$0xff] %vm724, %v723
    %s726 = scalar_lea.vmem [#allocation0], 64
    %v727 = vld [vmem:[%s726] ss:$8 sm:$0xf]
    %s728 = scalar_lea.vmem [#allocation0], 64
    %v729 = vld [vmem:[%s728] ss:$8 sm:$0xf0]
    %vm730 = vcmask 1047556
    %v731 = vsel %vm730, %v729, %v727
    %vm732 = vcmask 523264
    %s733 = scalar_lea.vmem %s1, 8
    %734 = vst.msk [vmem:[%s733] sm:$0xff] %vm732, %v731
    %s735 = scalar_lea.vmem [#allocation0], 128
    %v736 = vld [vmem:[%s735] ss:$8 sm:$0xf]
    %s737 = scalar_lea.vmem [#allocation0], 128
    %v738 = vld [vmem:[%s737] ss:$8 sm:$0xf0]
    %vm739 = vcmask 1047556
    %v740 = vsel %vm739, %v738, %v736
    %vm741 = vcmask 523264
    %s742 = scalar_lea.vmem %s1, 16
    %743 = vst.msk [vmem:[%s742] sm:$0xff] %vm741, %v740
    %s744 = scalar_lea.vmem [#allocation0], 192
    %v745 = vld [vmem:[%s744] ss:$8 sm:$0xf]
    %s746 = scalar_lea.vmem [#allocation0], 192
    %v747 = vld [vmem:[%s746] ss:$8 sm:$0xf0]
    %vm748 = vcmask 1047556
    %v749 = vsel %vm748, %v747, %v745
    %vm750 = vcmask 523264
    %s751 = scalar_lea.vmem %s1, 24
    %752 = vst.msk [vmem:[%s751] sm:$0xff] %vm750, %v749
    %s753 = scalar_lea.vmem [#allocation0], 256
    %v754 = vld [vmem:[%s753] ss:$8 sm:$0xf]
    %s755 = scalar_lea.vmem [#allocation0], 256
    %v756 = vld [vmem:[%s755] ss:$8 sm:$0xf0]
    %vm757 = vcmask 1047556
    %v758 = vsel %vm757, %v756, %v754
    %vm759 = vcmask 523264
    %s760 = scalar_lea.vmem %s1, 32
    %761 = vst.msk [vmem:[%s760] sm:$0xff] %vm759, %v758
    %s762 = scalar_lea.vmem [#allocation0], 320
    %v763 = vld [vmem:[%s762] ss:$8 sm:$0xf]
    %s764 = scalar_lea.vmem [#allocation0], 320
    %v765 = vld [vmem:[%s764] ss:$8 sm:$0xf0]
    %vm766 = vcmask 1047556
    %v767 = vsel %vm766, %v765, %v763
    %vm768 = vcmask 523264
    %s769 = scalar_lea.vmem %s1, 40
    %770 = vst.msk [vmem:[%s769] sm:$0xff] %vm768, %v767
    %s771 = scalar_lea.vmem [#allocation0], 384
    %v772 = vld [vmem:[%s771] ss:$8 sm:$0xf]
    %s773 = scalar_lea.vmem [#allocation0], 384
    %v774 = vld [vmem:[%s773] ss:$8 sm:$0xf0]
    %vm775 = vcmask 1047556
    %v776 = vsel %vm775, %v774, %v772
    %vm777 = vcmask 523264
    %s778 = scalar_lea.vmem %s1, 48
    %779 = vst.msk [vmem:[%s778] sm:$0xff] %vm777, %v776
    %s780 = scalar_lea.vmem [#allocation0], 448
    %v781 = vld [vmem:[%s780] ss:$8 sm:$0xf]
    %s782 = scalar_lea.vmem [#allocation0], 448
    %v783 = vld [vmem:[%s782] ss:$8 sm:$0xf0]
    %vm784 = vcmask 1047556
    %v785 = vsel %vm784, %v783, %v781
    %vm786 = vcmask 523264
    %s787 = scalar_lea.vmem %s1, 56
    %788 = vst.msk [vmem:[%s787] sm:$0xff] %vm786, %v785
    %s789 = scalar_lea.vmem [#allocation0], 512
    %v790 = vld [vmem:[%s789] ss:$8 sm:$0xf]
    %s791 = scalar_lea.vmem [#allocation0], 512
    %v792 = vld [vmem:[%s791] ss:$8 sm:$0xf0]
    %vm793 = vcmask 1047556
    %v794 = vsel %vm793, %v792, %v790
    %vm795 = vcmask 523264
    %s796 = scalar_lea.vmem %s1, 64
    %797 = vst.msk [vmem:[%s796] sm:$0xff] %vm795, %v794
    %s798 = scalar_lea.vmem [#allocation0], 576
    %v799 = vld [vmem:[%s798] ss:$8 sm:$0xf]
    %s800 = scalar_lea.vmem [#allocation0], 576
    %v801 = vld [vmem:[%s800] ss:$8 sm:$0xf0]
    %vm802 = vcmask 1047556
    %v803 = vsel %vm802, %v801, %v799
    %vm804 = vcmask 523264
    %s805 = scalar_lea.vmem %s1, 72
    %806 = vst.msk [vmem:[%s805] sm:$0xff] %vm804, %v803
    %s807 = scalar_lea.vmem [#allocation0], 640
    %v808 = vld [vmem:[%s807] ss:$8 sm:$0xf]
    %s809 = scalar_lea.vmem [#allocation0], 640
    %v810 = vld [vmem:[%s809] ss:$8 sm:$0xf0]
    %vm811 = vcmask 1047556
    %v812 = vsel %vm811, %v810, %v808
    %vm813 = vcmask 523264
    %s814 = scalar_lea.vmem %s1, 80
    %815 = vst.msk [vmem:[%s814] sm:$0xff] %vm813, %v812
    %s816 = scalar_lea.vmem [#allocation0], 704
    %v817 = vld [vmem:[%s816] ss:$8 sm:$0xf]
    %s818 = scalar_lea.vmem [#allocation0], 704
    %v819 = vld [vmem:[%s818] ss:$8 sm:$0xf0]
    %vm820 = vcmask 1047556
    %v821 = vsel %vm820, %v819, %v817
    %vm822 = vcmask 523264
    %s823 = scalar_lea.vmem %s1, 88
    %824 = vst.msk [vmem:[%s823] sm:$0xff] %vm822, %v821
    %s825 = scalar_lea.vmem [#allocation0], 768
    %v826 = vld [vmem:[%s825] ss:$8 sm:$0xf]
    %s827 = scalar_lea.vmem [#allocation0], 768
    %v828 = vld [vmem:[%s827] ss:$8 sm:$0xf0]
    %vm829 = vcmask 1047556
    %v830 = vsel %vm829, %v828, %v826
    %vm831 = vcmask 523264
    %s832 = scalar_lea.vmem %s1, 96
    %833 = vst.msk [vmem:[%s832] sm:$0xff] %vm831, %v830
    %s834 = scalar_lea.vmem [#allocation0], 832
    %v835 = vld [vmem:[%s834] ss:$8 sm:$0xf]
    %s836 = scalar_lea.vmem [#allocation0], 832
    %v837 = vld [vmem:[%s836] ss:$8 sm:$0xf0]
    %vm838 = vcmask 1047556
    %v839 = vsel %vm838, %v837, %v835
    %vm840 = vcmask 523264
    %s841 = scalar_lea.vmem %s1, 104
    %842 = vst.msk [vmem:[%s841] sm:$0xff] %vm840, %v839
    %s843 = scalar_lea.vmem [#allocation0], 896
    %v844 = vld [vmem:[%s843] ss:$8 sm:$0xf]
    %s845 = scalar_lea.vmem [#allocation0], 896
    %v846 = vld [vmem:[%s845] ss:$8 sm:$0xf0]
    %vm847 = vcmask 1047556
    %v848 = vsel %vm847, %v846, %v844
    %vm849 = vcmask 523264
    %s850 = scalar_lea.vmem %s1, 112
    %851 = vst.msk [vmem:[%s850] sm:$0xff] %vm849, %v848
    %s852 = scalar_lea.vmem [#allocation0], 960
    %v853 = vld [vmem:[%s852] ss:$8 sm:$0xf]
    %s854 = scalar_lea.vmem [#allocation0], 960
    %v855 = vld [vmem:[%s854] ss:$8 sm:$0xf0]
    %vm856 = vcmask 1047556
    %v857 = vsel %vm856, %v855, %v853
    %vm858 = vcmask 523264
    %s859 = scalar_lea.vmem %s1, 120
    %860 = vst.msk [vmem:[%s859] sm:$0xff] %vm858, %v857
    %s861 = scalar_lea.vmem [#allocation0], 1024
    %v862 = vld [vmem:[%s861] ss:$8 sm:$0xf]
    %s863 = scalar_lea.vmem [#allocation0], 1024
    %v864 = vld [vmem:[%s863] ss:$8 sm:$0xf0]
    %vm865 = vcmask 1047556
    %v866 = vsel %vm865, %v864, %v862
    %vm867 = vcmask 523264
    %s868 = scalar_lea.vmem %s1, 128
    %869 = vst.msk [vmem:[%s868] sm:$0xff] %vm867, %v866
    %s870 = scalar_lea.vmem [#allocation0], 1088
    %v871 = vld [vmem:[%s870] ss:$8 sm:$0xf]
    %s872 = scalar_lea.vmem [#allocation0], 1088
    %v873 = vld [vmem:[%s872] ss:$8 sm:$0xf0]
    %vm874 = vcmask 1047556
    %v875 = vsel %vm874, %v873, %v871
    %vm876 = vcmask 523264
    %s877 = scalar_lea.vmem %s1, 136
    %878 = vst.msk [vmem:[%s877] sm:$0xff] %vm876, %v875
    %s879 = scalar_lea.vmem [#allocation0], 1
    %v880 = vld [vmem:[%s879] ss:$8 sm:$0xf]
    %s881 = scalar_lea.vmem [#allocation0], 1
    %v882 = vld [vmem:[%s881] ss:$8 sm:$0xf0]
    %vm883 = vcmask 1047556
    %v884 = vsel %vm883, %v882, %v880
    %885 = vrot.lane.b32.xlu0 %v884, 64
    %v886 = vpop.permute.xlu0 %885
    %vm887 = vcmask 1048064
    %888 = vst.msk [vmem:[%s1] sm:$0xff] %vm887, %v886
    %s889 = scalar_lea.vmem [#allocation0], 257
    %v890 = vld [vmem:[%s889] ss:$8 sm:$0xf]
    %s891 = scalar_lea.vmem [#allocation0], 257
    %v892 = vld [vmem:[%s891] ss:$8 sm:$0xf0]
    %vm893 = vcmask 1047556
    %v894 = vsel %vm893, %v892, %v890
    %895 = vrot.lane.b32.xlu0 %v894, 64
    %v896 = vpop.permute.xlu0 %895
    %vm897 = vcmask 1048064
    %s898 = scalar_lea.vmem %s1, 32
    %899 = vst.msk [vmem:[%s898] sm:$0xff] %vm897, %v896
    %s900 = scalar_lea.vmem [#allocation0], 513
    %v901 = vld [vmem:[%s900] ss:$8 sm:$0xf]
    %s902 = scalar_lea.vmem [#allocation0], 513
    %v903 = vld [vmem:[%s902] ss:$8 sm:$0xf0]
    %vm904 = vcmask 1047556
    %v905 = vsel %vm904, %v903, %v901
    %906 = vrot.lane.b32.xlu0 %v905, 64
    %v907 = vpop.permute.xlu0 %906
    %vm908 = vcmask 1048064
    %s909 = scalar_lea.vmem %s1, 64
    %910 = vst.msk [vmem:[%s909] sm:$0xff] %vm908, %v907
    %s911 = scalar_lea.vmem [#allocation0], 769
    %v912 = vld [vmem:[%s911] ss:$8 sm:$0xf]
    %s913 = scalar_lea.vmem [#allocation0], 769
    %v914 = vld [vmem:[%s913] ss:$8 sm:$0xf0]
    %vm915 = vcmask 1047556
    %v916 = vsel %vm915, %v914, %v912
    %917 = vrot.lane.b32.xlu0 %v916, 64
    %v918 = vpop.permute.xlu0 %917
    %vm919 = vcmask 1048064
    %s920 = scalar_lea.vmem %s1, 96
    %921 = vst.msk [vmem:[%s920] sm:$0xff] %vm919, %v918
    %s922 = scalar_lea.vmem [#allocation0], 1025
    %v923 = vld [vmem:[%s922] ss:$8 sm:$0xf]
    %s924 = scalar_lea.vmem [#allocation0], 1025
    %v925 = vld [vmem:[%s924] ss:$8 sm:$0xf0]
    %vm926 = vcmask 1047556
    %v927 = vsel %vm926, %v925, %v923
    %928 = vrot.lane.b32.xlu0 %v927, 64
    %v929 = vpop.permute.xlu0 %928
    %vm930 = vcmask 1048064
    %s931 = scalar_lea.vmem %s1, 128
    %932 = vst.msk [vmem:[%s931] sm:$0xff] %vm930, %v929
    %s933 = scalar_lea.vmem [#allocation0], 65
    %v934 = vld [vmem:[%s933] ss:$8 sm:$0xf]
    %s935 = scalar_lea.vmem [#allocation0], 65
    %v936 = vld [vmem:[%s935] ss:$8 sm:$0xf0]
    %vm937 = vcmask 1047556
    %v938 = vsel %vm937, %v936, %v934
    %939 = vrot.lane.b32.xlu0 %v938, 64
    %v940 = vpop.permute.xlu0 %939
    %vm941 = vcmask 1048064
    %s942 = scalar_lea.vmem %s1, 8
    %943 = vst.msk [vmem:[%s942] sm:$0xff] %vm941, %v940
    %s944 = scalar_lea.vmem [#allocation0], 321
    %v945 = vld [vmem:[%s944] ss:$8 sm:$0xf]
    %s946 = scalar_lea.vmem [#allocation0], 321
    %v947 = vld [vmem:[%s946] ss:$8 sm:$0xf0]
    %vm948 = vcmask 1047556
    %v949 = vsel %vm948, %v947, %v945
    %950 = vrot.lane.b32.xlu0 %v949, 64
    %v951 = vpop.permute.xlu0 %950
    %vm952 = vcmask 1048064
    %s953 = scalar_lea.vmem %s1, 40
    %954 = vst.msk [vmem:[%s953] sm:$0xff] %vm952, %v951
    %s955 = scalar_lea.vmem [#allocation0], 577
    %v956 = vld [vmem:[%s955] ss:$8 sm:$0xf]
    %s957 = scalar_lea.vmem [#allocation0], 577
    %v958 = vld [vmem:[%s957] ss:$8 sm:$0xf0]
    %vm959 = vcmask 1047556
    %v960 = vsel %vm959, %v958, %v956
    %961 = vrot.lane.b32.xlu0 %v960, 64
    %v962 = vpop.permute.xlu0 %961
    %vm963 = vcmask 1048064
    %s964 = scalar_lea.vmem %s1, 72
    %965 = vst.msk [vmem:[%s964] sm:$0xff] %vm963, %v962
    %s966 = scalar_lea.vmem [#allocation0], 833
    %v967 = vld [vmem:[%s966] ss:$8 sm:$0xf]
    %s968 = scalar_lea.vmem [#allocation0], 833
    %v969 = vld [vmem:[%s968] ss:$8 sm:$0xf0]
    %vm970 = vcmask 1047556
    %v971 = vsel %vm970, %v969, %v967
    %972 = vrot.lane.b32.xlu0 %v971, 64
    %v973 = vpop.permute.xlu0 %972
    %vm974 = vcmask 1048064
    %s975 = scalar_lea.vmem %s1, 104
    %976 = vst.msk [vmem:[%s975] sm:$0xff] %vm974, %v973
    %s977 = scalar_lea.vmem [#allocation0], 1089
    %v978 = vld [vmem:[%s977] ss:$8 sm:$0xf]
    %s979 = scalar_lea.vmem [#allocation0], 1089
    %v980 = vld [vmem:[%s979] ss:$8 sm:$0xf0]
    %vm981 = vcmask 1047556
    %v982 = vsel %vm981, %v980, %v978
    %983 = vrot.lane.b32.xlu0 %v982, 64
    %v984 = vpop.permute.xlu0 %983
    %vm985 = vcmask 1048064
    %s986 = scalar_lea.vmem %s1, 136
    %987 = vst.msk [vmem:[%s986] sm:$0xff] %vm985, %v984
    %s988 = scalar_lea.vmem [#allocation0], 129
    %v989 = vld [vmem:[%s988] ss:$8 sm:$0xf]
    %s990 = scalar_lea.vmem [#allocation0], 129
    %v991 = vld [vmem:[%s990] ss:$8 sm:$0xf0]
    %vm992 = vcmask 1047556
    %v993 = vsel %vm992, %v991, %v989
    %994 = vrot.lane.b32.xlu0 %v993, 64
    %v995 = vpop.permute.xlu0 %994
    %vm996 = vcmask 1048064
    %s997 = scalar_lea.vmem %s1, 16
    %998 = vst.msk [vmem:[%s997] sm:$0xff] %vm996, %v995
    %s999 = scalar_lea.vmem [#allocation0], 385
    %v1000 = vld [vmem:[%s999] ss:$8 sm:$0xf]
    %s1001 = scalar_lea.vmem [#allocation0], 385
    %v1002 = vld [vmem:[%s1001] ss:$8 sm:$0xf0]
    %vm1003 = vcmask 1047556
    %v1004 = vsel %vm1003, %v1002, %v1000
    %1005 = vrot.lane.b32.xlu0 %v1004, 64
    %v1006 = vpop.permute.xlu0 %1005
    %vm1007 = vcmask 1048064
    %s1008 = scalar_lea.vmem %s1, 48
    %1009 = vst.msk [vmem:[%s1008] sm:$0xff] %vm1007, %v1006
    %s1010 = scalar_lea.vmem [#allocation0], 641
    %v1011 = vld [vmem:[%s1010] ss:$8 sm:$0xf]
    %s1012 = scalar_lea.vmem [#allocation0], 641
    %v1013 = vld [vmem:[%s1012] ss:$8 sm:$0xf0]
    %vm1014 = vcmask 1047556
    %v1015 = vsel %vm1014, %v1013, %v1011
    %1016 = vrot.lane.b32.xlu0 %v1015, 64
    %v1017 = vpop.permute.xlu0 %1016
    %vm1018 = vcmask 1048064
    %s1019 = scalar_lea.vmem %s1, 80
    %1020 = vst.msk [vmem:[%s1019] sm:$0xff] %vm1018, %v1017
    %s1021 = scalar_lea.vmem [#allocation0], 897
    %v1022 = vld [vmem:[%s1021] ss:$8 sm:$0xf]
    %s1023 = scalar_lea.vmem [#allocation0], 897
    %v1024 = vld [vmem:[%s1023] ss:$8 sm:$0xf0]
    %vm1025 = vcmask 1047556
    %v1026 = vsel %vm1025, %v1024, %v1022
    %1027 = vrot.lane.b32.xlu0 %v1026, 64
    %v1028 = vpop.permute.xlu0 %1027
    %vm1029 = vcmask 1048064
    %s1030 = scalar_lea.vmem %s1, 112
    %1031 = vst.msk [vmem:[%s1030] sm:$0xff] %vm1029, %v1028
    %s1032 = scalar_lea.vmem [#allocation0], 193
    %v1033 = vld [vmem:[%s1032] ss:$8 sm:$0xf]
    %s1034 = scalar_lea.vmem [#allocation0], 193
    %v1035 = vld [vmem:[%s1034] ss:$8 sm:$0xf0]
    %vm1036 = vcmask 1047556
    %v1037 = vsel %vm1036, %v1035, %v1033
    %1038 = vrot.lane.b32.xlu0 %v1037, 64
    %v1039 = vpop.permute.xlu0 %1038
    %vm1040 = vcmask 1048064
    %s1041 = scalar_lea.vmem %s1, 24
    %1042 = vst.msk [vmem:[%s1041] sm:$0xff] %vm1040, %v1039
    %s1043 = scalar_lea.vmem [#allocation0], 449
    %v1044 = vld [vmem:[%s1043] ss:$8 sm:$0xf]
    %s1045 = scalar_lea.vmem [#allocation0], 449
    %v1046 = vld [vmem:[%s1045] ss:$8 sm:$0xf0]
    %vm1047 = vcmask 1047556
    %v1048 = vsel %vm1047, %v1046, %v1044
    %1049 = vrot.lane.b32.xlu0 %v1048, 64
    %v1050 = vpop.permute.xlu0 %1049
    %vm1051 = vcmask 1048064
    %s1052 = scalar_lea.vmem %s1, 56
    %1053 = vst.msk [vmem:[%s1052] sm:$0xff] %vm1051, %v1050
    %s1054 = scalar_lea.vmem [#allocation0], 705
    %v1055 = vld [vmem:[%s1054] ss:$8 sm:$0xf]
    %s1056 = scalar_lea.vmem [#allocation0], 705
    %v1057 = vld [vmem:[%s1056] ss:$8 sm:$0xf0]
    %vm1058 = vcmask 1047556
    %v1059 = vsel %vm1058, %v1057, %v1055
    %1060 = vrot.lane.b32.xlu0 %v1059, 64
    %v1061 = vpop.permute.xlu0 %1060
    %vm1062 = vcmask 1048064
    %s1063 = scalar_lea.vmem %s1, 88
    %1064 = vst.msk [vmem:[%s1063] sm:$0xff] %vm1062, %v1061
    %s1065 = scalar_lea.vmem [#allocation0], 961
    %v1066 = vld [vmem:[%s1065] ss:$8 sm:$0xf]
    %s1067 = scalar_lea.vmem [#allocation0], 961
    %v1068 = vld [vmem:[%s1067] ss:$8 sm:$0xf0]
    %vm1069 = vcmask 1047556
    %v1070 = vsel %vm1069, %v1068, %v1066
    %1071 = vrot.lane.b32.xlu0 %v1070, 64
    %v1072 = vpop.permute.xlu0 %1071
    %vm1073 = vcmask 1048064
    %s1074 = scalar_lea.vmem %s1, 120
    %1075 = vst.msk [vmem:[%s1074] sm:$0xff] %vm1073, %v1072

// kernel: image_to_latent_forward.1
$region0: #{image_to_latent_forward.1}
  #allocation0 [shape = 'u32[]', space=smem, size = 0x4, offset = 0x4, fixed_abs, tag = 'smem constant byte address 0x4 - core index']
  #allocation1 [shape = 'u32[144,128]{1,0:T(1,128)}', space=vmem, size = 0x12000, scoped, tag = 'internal scratch']
  %s0 = inlined_call_operand.vmem [shape: bf16[2048,128], index: 0, kind: input, shape index: {}]
  %s1 = inlined_call_operand.vmem [shape: bf16[144,2048], index: 1, kind: input, shape index: {}]
  %s2 = inlined_call_operand.vmem [shape: f32[144,128], index: 2, kind: input, shape index: {}]
  %s3 = inlined_call_operand.vmem [shape: f32[144,128], index: 3, kind: input, shape index: {}]
  %s4 = inlined_call_operand.vmem [shape: f32[144,128], index: 4, kind: output, shape index: {}]
  %s5 = sld [smem:[#allocation0]]
  $region49: #{image_to_latent_forward.1} parent=0
    _
  %s7 = ssub.s32 1, %s5
  %s8 = scalar_select 0, %s7, %s5
  loop: start=0, step=1, limit=4
  $region2: #{image_to_latent_forward.1} parent=0 // loop_pre_header
    _
  $region3: #{image_to_latent_forward.1} parent=0 // loop_header
    %s10 = sphi 0, %s14
    %p11 = scmp.ge.s32.totalorder %s10, 4
    %s18 = sphi 0, %s18
    %s20 = sphi 0, %s18
    %s21 = sphi 0, %s20
    %s35 = sphi 0, %s21
    %s41 = sphi 0, %s43
    %s44 = sphi 0, %s41
    %s45 = sphi 0, %s44
    %s61 = sphi 0, %s45
    %s67 = sphi 0, %s69
    %s70 = sphi 0, %s67
    %s71 = sphi 0, %s70
    %s87 = sphi 0, %s71
    %s93 = sphi 0, %s95
    %s96 = sphi 0, %s93
    %s97 = sphi 0, %s96
    %s113 = sphi 0, %s97
    %s119 = sphi 0, %s121
    %s122 = sphi 0, %s119
    %s123 = sphi 0, %s122
    %s139 = sphi 0, %s123
  $region4: #{image_to_latent_forward.1} parent=0 // loop_header_branch
    %13 = sbr.rel (%p11) target = $region8
  $region5: #{image_to_latent_forward.1} parent=0 // loop_body
    %s15 = ssub.s32 %s10, 1
    %s16 = ssub.s32 %s10, 2
    %s17 = sadd.s32 %s10, 1
    %s19 = sadd.s32 %s18, 1
    %p22 = scmp.eq.s32.totalorder %s10, 1
    %p23 = scmp.ne.s32.totalorder %s18, %s20
    %p24 = scmp.eq.s32.totalorder %s10, 0
    %p25 = por %p23, %p24
    %p26 = scmp.ne.s32.totalorder %s18, %s20
    %p27 = scmp.eq.s32.totalorder %s15, 1
    %p28 = por %p26, %p27
    %p29 = scmp.ne.s32.totalorder %s20, %s21
    %p30 = scmp.eq.s32.totalorder %s15, 0
    %p31 = por %p29, %p30
    %p32 = scmp.ne.s32.totalorder %s20, %s21
    %p33 = scmp.eq.s32.totalorder %s16, 1
    %p34 = por %p32, %p33
    %p36 = scmp.ne.s32.totalorder %s21, %s35
    %p37 = scmp.eq.s32.totalorder %s16, 0
    %p38 = por %p36, %p37
    %s39 = ssub.s32 %s10, %s17
    %p40 = scmp.eq.s32.totalorder %s39, 0
    %s42 = sadd.s32 %s41, 1
    %s43 = scalar_select %p40, %s41, %s42
    %p46 = pneg %p40
    %p47 = scmp.eq.s32.totalorder %s10, 1
    %p48 = por %p46, %p47
    %p49 = scmp.ne.s32.totalorder %s41, %s44
    %p50 = scmp.eq.s32.totalorder %s10, 0
    %p51 = por %p49, %p50
    %p52 = scmp.ne.s32.totalorder %s41, %s44
    %p53 = scmp.eq.s32.totalorder %s15, 1
    %p54 = por %p52, %p53
    %p55 = scmp.ne.s32.totalorder %s44, %s45
    %p56 = scmp.eq.s32.totalorder %s15, 0
    %p57 = por %p55, %p56
    %p58 = scmp.ne.s32.totalorder %s44, %s45
    %p59 = scmp.eq.s32.totalorder %s16, 1
    %p60 = por %p58, %p59
    %p62 = scmp.ne.s32.totalorder %s45, %s61
    %p63 = scmp.eq.s32.totalorder %s16, 0
    %p64 = por %p62, %p63
    %s65 = ssub.s32 %s10, %s17
    %p66 = scmp.eq.s32.totalorder %s65, 0
    %s68 = sadd.s32 %s67, 1
    %s69 = scalar_select %p66, %s67, %s68
    %p72 = pneg %p66
    %p73 = scmp.eq.s32.totalorder %s10, 1
    %p74 = por %p72, %p73
    %p75 = scmp.ne.s32.totalorder %s67, %s70
    %p76 = scmp.eq.s32.totalorder %s10, 0
    %p77 = por %p75, %p76
    %p78 = scmp.ne.s32.totalorder %s67, %s70
    %p79 = scmp.eq.s32.totalorder %s15, 1
    %p80 = por %p78, %p79
    %p81 = scmp.ne.s32.totalorder %s70, %s71
    %p82 = scmp.eq.s32.totalorder %s15, 0
    %p83 = por %p81, %p82
    %p84 = scmp.ne.s32.totalorder %s70, %s71
    %p85 = scmp.eq.s32.totalorder %s16, 1
    %p86 = por %p84, %p85
    %p88 = scmp.ne.s32.totalorder %s71, %s87
    %p89 = scmp.eq.s32.totalorder %s16, 0
    %p90 = por %p88, %p89
    %s91 = ssub.s32 %s10, %s17
    %p92 = scmp.eq.s32.totalorder %s91, 0
    %s94 = sadd.s32 %s93, 1
    %s95 = scalar_select %p92, %s93, %s94
    %p98 = pneg %p92
    %p99 = scmp.eq.s32.totalorder %s10, 1
    %p100 = por %p98, %p99
    %p101 = scmp.ne.s32.totalorder %s93, %s96
    %p102 = scmp.eq.s32.totalorder %s10, 0
    %p103 = por %p101, %p102
    %p104 = scmp.ne.s32.totalorder %s93, %s96
    %p105 = scmp.eq.s32.totalorder %s15, 1
    %p106 = por %p104, %p105
    %p107 = scmp.ne.s32.totalorder %s96, %s97
    %p108 = scmp.eq.s32.totalorder %s15, 0
    %p109 = por %p107, %p108
    %p110 = scmp.ne.s32.totalorder %s96, %s97
    %p111 = scmp.eq.s32.totalorder %s16, 1
    %p112 = por %p110, %p111
    %p114 = scmp.ne.s32.totalorder %s97, %s113
    %p115 = scmp.eq.s32.totalorder %s16, 0
    %p116 = por %p114, %p115
    %s117 = ssub.s32 %s10, %s17
    %p118 = scmp.eq.s32.totalorder %s117, 0
    %s120 = sadd.s32 %s119, 1
    %s121 = scalar_select %p118, %s119, %s120
    %p124 = pneg %p118
    %p125 = scmp.eq.s32.totalorder %s10, 1
    %p126 = por %p124, %p125
    %p127 = scmp.ne.s32.totalorder %s119, %s122
    %p128 = scmp.eq.s32.totalorder %s10, 0
    %p129 = por %p127, %p128
    %p130 = scmp.ne.s32.totalorder %s119, %s122
    %p131 = scmp.eq.s32.totalorder %s15, 1
    %p132 = por %p130, %p131
    %p133 = scmp.ne.s32.totalorder %s122, %s123
    %p134 = scmp.eq.s32.totalorder %s15, 0
    %p135 = por %p133, %p134
    %p136 = scmp.ne.s32.totalorder %s122, %s123
    %p137 = scmp.eq.s32.totalorder %s16, 1
    %p138 = por %p136, %p137
    %p140 = scmp.ne.s32.totalorder %s123, %s139
    %p141 = scmp.eq.s32.totalorder %s16, 0
    %p142 = por %p140, %p141
    %p143 = scmp.le.s32.totalorder 1, %s10
    %p144 = scmp.lt.s32.totalorder %s10, 3
    %p145 = pnand %p143, %p144
    %p146 = pneg %p145
    // Predicated region
    $region9: #{image_to_latent_forward.1} parent=5 // pred_check
      _
    $region10: #{image_to_latent_forward.1} parent=5 // pred_check_branch
      %148 = sbr.rel (%p145) target = $region12
    $region11: #{image_to_latent_forward.1} parent=5 // pred_region
      %s149 = ssub.s32 %s10, 1
      // Predicated region
      $region13: #{image_to_latent_forward.1} parent=11 // pred_check
        %p150 = pneg %p31
      $region14: #{image_to_latent_forward.1} parent=11 // pred_check_branch
        %152 = sbr.rel (%p150) target = $region16
      $region15: #{image_to_latent_forward.1} parent=11 // pred_region
        _
      $region16: #{image_to_latent_forward.1} parent=11 // pred_fallthru
        _
    $region12: #{image_to_latent_forward.1} parent=5 // pred_fallthru
      _
    %p153 = scmp.lt.s32.totalorder %s10, 2
    // Predicated region
    $region17: #{image_to_latent_forward.1} parent=5 // pred_check
      %p154 = pneg %p153
    $region18: #{image_to_latent_forward.1} parent=5 // pred_check_branch
      %156 = sbr.rel (%p154) target = $region20
    $region19: #{image_to_latent_forward.1} parent=5 // pred_region
      // Predicated region
      $region21: #{image_to_latent_forward.1} parent=19 // pred_check
        %p157 = pneg %p51
      $region22: #{image_to_latent_forward.1} parent=19 // pred_check_branch
        %159 = sbr.rel (%p157) target = $region24
      $region23: #{image_to_latent_forward.1} parent=19 // pred_region
        %s160 = smul.u32 9, %s10
        %p161 = scmp.lt.s32.totalorder %s160, 17
        %s162 = scalar_select %p161, %s160, 17
        %s163 = smul.addr %s162, 16
        %s164 = smul.addr %s163, 4
        %s165 = scalar_lea.vmem %s1, %s164
        %s166 = smul.u32 9, %s10
      $region24: #{image_to_latent_forward.1} parent=19 // pred_fallthru
        _
      // Predicated region
      $region25: #{image_to_latent_forward.1} parent=19 // pred_check
        %p167 = pneg %p77
      $region26: #{image_to_latent_forward.1} parent=19 // pred_check_branch
        %169 = sbr.rel (%p167) target = $region28
      $region27: #{image_to_latent_forward.1} parent=19 // pred_region
        %s170 = smul.u32 9, %s10
        %p171 = scmp.lt.s32.totalorder %s170, 17
        %s172 = scalar_select %p171, %s170, 17
        %s173 = smul.addr %s172, 8
        %s174 = scalar_lea.vmem %s2, %s173
        %s175 = smul.u32 9, %s10
      $region28: #{image_to_latent_forward.1} parent=19 // pred_fallthru
        _
      // Predicated region
      $region29: #{image_to_latent_forward.1} parent=19 // pred_check
        %p176 = pneg %p103
      $region30: #{image_to_latent_forward.1} parent=19 // pred_check_branch
        %178 = sbr.rel (%p176) target = $region32
      $region31: #{image_to_latent_forward.1} parent=19 // pred_region
        %s179 = smul.u32 9, %s10
        %p180 = scmp.lt.s32.totalorder %s179, 17
        %s181 = scalar_select %p180, %s179, 17
        %s182 = smul.addr %s181, 8
        %s183 = scalar_lea.vmem %s3, %s182
        %s184 = smul.u32 9, %s10
      $region32: #{image_to_latent_forward.1} parent=19 // pred_fallthru
        _
    $region20: #{image_to_latent_forward.1} parent=5 // pred_fallthru
      _
    %p185 = scmp.le.s32.totalorder 1, %s10
    %p186 = scmp.lt.s32.totalorder %s10, 3
    %p187 = pnand %p185, %p186
    %p188 = pneg %p187
    // Predicated region
    $region33: #{image_to_latent_forward.1} parent=5 // pred_check
      _
    $region34: #{image_to_latent_forward.1} parent=5 // pred_check_branch
      %190 = sbr.rel (%p187) target = $region36
    $region35: #{image_to_latent_forward.1} parent=5 // pred_region
      %s191 = ssub.s32 %s10, 1
      %p192 = pneg %p31
      %p193 = pneg %p28
      %s194 = smul.u32 9, %s15
      %p195 = scmp.lt.s32.totalorder %s194, 17
      %s196 = scalar_select %p195, %s194, 17
      %s197 = smul.addr %s196, 16
      %s198 = smul.addr %s197, 4
      %s199 = scalar_lea.vmem %s1, %s198
      %p200 = pneg %p57
      %p201 = pneg %p54
      %s202 = smul.u32 9, %s15
      %p203 = scmp.lt.s32.totalorder %s202, 17
      %s204 = scalar_select %p203, %s202, 17
      %s205 = smul.addr %s204, 8
      %s206 = scalar_lea.vmem %s2, %s205
      %p207 = pneg %p83
      %p208 = pneg %p80
      %s209 = smul.u32 9, %s15
      %p210 = scmp.lt.s32.totalorder %s209, 17
      %s211 = scalar_select %p210, %s209, 17
      %s212 = smul.addr %s211, 8
      %s213 = scalar_lea.vmem %s3, %s212
      %p214 = pneg %p109
      %p215 = pneg %p106
      %p216 = pneg %p135
      %p217 = pneg %p132
      %s218 = smul.u32 9, %s15
      %p219 = scmp.lt.s32.totalorder %s218, 17
      %s220 = scalar_select %p219, %s218, 17
      %s221 = smul.addr %s220, 8
      %s222 = scalar_lea.vmem %s4, %s221
      %s223 = smul.u32 9, %s15
      %p224 = scmp.lt.s32.totalorder %s223, 17
      %s225 = scalar_select %p224, %s223, 17
      %s226 = smul.addr %s225, 16
      %s227 = smul.addr %s226, 4
      %s228 = scalar_lea.vmem %s1, %s227
      %s229 = smul.u32 9, %s15
      %s230 = smul.u32 9, %s15
      %p231 = scmp.lt.s32.totalorder %s230, 17
      %s232 = scalar_select %p231, %s230, 17
      %s233 = smul.addr %s232, 8
      %s234 = scalar_lea.vmem %s2, %s233
      %s235 = smul.u32 9, %s15
      %s236 = smul.u32 9, %s15
      %p237 = scmp.lt.s32.totalorder %s236, 17
      %s238 = scalar_select %p237, %s236, 17
      %s239 = smul.addr %s238, 8
      %s240 = scalar_lea.vmem %s3, %s239
      %s241 = smul.u32 9, %s15
      %s242 = smul.u32 9, %s15
      %p243 = scmp.lt.s32.totalorder %s242, 17
      %s244 = scalar_select %p243, %s242, 17
      %s245 = smul.addr %s244, 8
      %s246 = scalar_lea.vmem %s4, %s245
      %s247 = smul.u32 9, %s15
      %v249 = vld [vmem:[%s228] sm:$0xff]
      %v250 = vld [vmem:[%s228 + $0x8] sm:$0xff]
      %v251 = vld [vmem:[%s228 + $0x10] sm:$0xff]
      %v252 = vld [vmem:[%s228 + $0x18] sm:$0xff]
      %v253 = vld [vmem:[%s228 + $0x20] sm:$0xff]
      %v254 = vld [vmem:[%s228 + $0x28] sm:$0xff]
      %v255 = vld [vmem:[%s228 + $0x30] sm:$0xff]
      %v256 = vld [vmem:[%s228 + $0x38] sm:$0xff]
      %v257 = vld [vmem:[%s228 + $0x40] sm:$0xff]
      %v258 = vld [vmem:[%s228 + $0x48] sm:$0xff]
      %v259 = vld [vmem:[%s228 + $0x50] sm:$0xff]
      %v260 = vld [vmem:[%s228 + $0x58] sm:$0xff]
      %v261 = vld [vmem:[%s228 + $0x60] sm:$0xff]
      %v262 = vld [vmem:[%s228 + $0x68] sm:$0xff]
      %v263 = vld [vmem:[%s228 + $0x70] sm:$0xff]
      %v264 = vld [vmem:[%s228 + $0x78] sm:$0xff]
      %v265 = vld [vmem:[%s228 + $0x80] sm:$0xff]
      %v266 = vld [vmem:[%s228 + $0x88] sm:$0xff]
      %v267 = vld [vmem:[%s228 + $0x90] sm:$0xff]
      %v268 = vld [vmem:[%s228 + $0x98] sm:$0xff]
      %v269 = vld [vmem:[%s228 + $0xa0] sm:$0xff]
      %v270 = vld [vmem:[%s228 + $0xa8] sm:$0xff]
      %v271 = vld [vmem:[%s228 + $0xb0] sm:$0xff]
      %v272 = vld [vmem:[%s228 + $0xb8] sm:$0xff]
      %v273 = vld [vmem:[%s228 + $0xc0] sm:$0xff]
      %v274 = vld [vmem:[%s228 + $0xc8] sm:$0xff]
      %v275 = vld [vmem:[%s228 + $0xd0] sm:$0xff]
      %v276 = vld [vmem:[%s228 + $0xd8] sm:$0xff]
      %v277 = vld [vmem:[%s228 + $0xe0] sm:$0xff]
      %v278 = vld [vmem:[%s228 + $0xe8] sm:$0xff]
      %v279 = vld [vmem:[%s228 + $0xf0] sm:$0xff]
      %v280 = vld [vmem:[%s228 + $0xf8] sm:$0xff]
      %v281 = vld [vmem:[%s228 + $0x100] sm:$0xff]
      %v282 = vld [vmem:[%s228 + $0x108] sm:$0xff]
      %v283 = vld [vmem:[%s228 + $0x110] sm:$0xff]
      %v284 = vld [vmem:[%s228 + $0x118] sm:$0xff]
      %v285 = vld [vmem:[%s228 + $0x120] sm:$0xff]
      %v286 = vld [vmem:[%s228 + $0x128] sm:$0xff]
      %v287 = vld [vmem:[%s228 + $0x130] sm:$0xff]
      %v288 = vld [vmem:[%s228 + $0x138] sm:$0xff]
      %v289 = vld [vmem:[%s228 + $0x140] sm:$0xff]
      %v290 = vld [vmem:[%s228 + $0x148] sm:$0xff]
      %v291 = vld [vmem:[%s228 + $0x150] sm:$0xff]
      %v292 = vld [vmem:[%s228 + $0x158] sm:$0xff]
      %v293 = vld [vmem:[%s228 + $0x160] sm:$0xff]
      %v294 = vld [vmem:[%s228 + $0x168] sm:$0xff]
      %v295 = vld [vmem:[%s228 + $0x170] sm:$0xff]
      %v296 = vld [vmem:[%s228 + $0x178] sm:$0xff]
      %v297 = vld [vmem:[%s228 + $0x180] sm:$0xff]
      %v298 = vld [vmem:[%s228 + $0x188] sm:$0xff]
      %v299 = vld [vmem:[%s228 + $0x190] sm:$0xff]
      %v300 = vld [vmem:[%s228 + $0x198] sm:$0xff]
      %v301 = vld [vmem:[%s228 + $0x1a0] sm:$0xff]
      %v302 = vld [vmem:[%s228 + $0x1a8] sm:$0xff]
      %v303 = vld [vmem:[%s228 + $0x1b0] sm:$0xff]
      %v304 = vld [vmem:[%s228 + $0x1b8] sm:$0xff]
      %v305 = vld [vmem:[%s228 + $0x1c0] sm:$0xff]
      %v306 = vld [vmem:[%s228 + $0x1c8] sm:$0xff]
      %v307 = vld [vmem:[%s228 + $0x1d0] sm:$0xff]
      %v308 = vld [vmem:[%s228 + $0x1d8] sm:$0xff]
      %v309 = vld [vmem:[%s228 + $0x1e0] sm:$0xff]
      %v310 = vld [vmem:[%s228 + $0x1e8] sm:$0xff]
      %v311 = vld [vmem:[%s228 + $0x1f0] sm:$0xff]
      %v312 = vld [vmem:[%s228 + $0x1f8] sm:$0xff]
      %v313 = vld [vmem:[%s228 + $0x200] sm:$0xff]
      %v314 = vld [vmem:[%s228 + $0x208] sm:$0xff]
      %v315 = vld [vmem:[%s228 + $0x210] sm:$0xff]
      %v316 = vld [vmem:[%s228 + $0x218] sm:$0xff]
      %v317 = vld [vmem:[%s228 + $0x220] sm:$0xff]
      %v318 = vld [vmem:[%s228 + $0x228] sm:$0xff]
      %v319 = vld [vmem:[%s228 + $0x230] sm:$0xff]
      %v320 = vld [vmem:[%s228 + $0x238] sm:$0xff]
      %v321 = vld [vmem:[%s0] sm:$0xf]
      %v322 = vld [vmem:[%s0 + $0x4] sm:$0xf]
      %v323 = vld [vmem:[%s0 + $0x8] sm:$0xf]
      %v324 = vld [vmem:[%s0 + $0xc] sm:$0xf]
      %v325 = vld [vmem:[%s0 + $0x10] sm:$0xf]
      %v326 = vld [vmem:[%s0 + $0x14] sm:$0xf]
      %v327 = vld [vmem:[%s0 + $0x18] sm:$0xf]
      %v328 = vld [vmem:[%s0 + $0x1c] sm:$0xf]
      %v329 = vld [vmem:[%s0 + $0x20] sm:$0xf]
      %v330 = vld [vmem:[%s0 + $0x24] sm:$0xf]
      %v331 = vld [vmem:[%s0 + $0x28] sm:$0xf]
      %v332 = vld [vmem:[%s0 + $0x2c] sm:$0xf]
      %v333 = vld [vmem:[%s0 + $0x30] sm:$0xf]
      %v334 = vld [vmem:[%s0 + $0x34] sm:$0xf]
      %v335 = vld [vmem:[%s0 + $0x38] sm:$0xf]
      %v336 = vld [vmem:[%s0 + $0x3c] sm:$0xf]
      %v337 = vld [vmem:[%s0 + $0x40] sm:$0xf]
      %v338 = vld [vmem:[%s0 + $0x44] sm:$0xf]
      %v339 = vld [vmem:[%s0 + $0x48] sm:$0xf]
      %v340 = vld [vmem:[%s0 + $0x4c] sm:$0xf]
      %v341 = vld [vmem:[%s0 + $0x50] sm:$0xf]
      %v342 = vld [vmem:[%s0 + $0x54] sm:$0xf]
      %v343 = vld [vmem:[%s0 + $0x58] sm:$0xf]
      %v344 = vld [vmem:[%s0 + $0x5c] sm:$0xf]
      %v345 = vld [vmem:[%s0 + $0x60] sm:$0xf]
      %v346 = vld [vmem:[%s0 + $0x64] sm:$0xf]
      %v347 = vld [vmem:[%s0 + $0x68] sm:$0xf]
      %v348 = vld [vmem:[%s0 + $0x6c] sm:$0xf]
      %v349 = vld [vmem:[%s0 + $0x70] sm:$0xf]
      %v350 = vld [vmem:[%s0 + $0x74] sm:$0xf]
      %v351 = vld [vmem:[%s0 + $0x78] sm:$0xf]
      %v352 = vld [vmem:[%s0 + $0x7c] sm:$0xf]
      %v353 = vld [vmem:[%s0 + $0x80] sm:$0xf]
      %v354 = vld [vmem:[%s0 + $0x84] sm:$0xf]
      %v355 = vld [vmem:[%s0 + $0x88] sm:$0xf]
      %v356 = vld [vmem:[%s0 + $0x8c] sm:$0xf]
      %v357 = vld [vmem:[%s0 + $0x90] sm:$0xf]
      %v358 = vld [vmem:[%s0 + $0x94] sm:$0xf]
      %v359 = vld [vmem:[%s0 + $0x98] sm:$0xf]
      %v360 = vld [vmem:[%s0 + $0x9c] sm:$0xf]
      %v361 = vld [vmem:[%s0 + $0xa0] sm:$0xf]
      %v362 = vld [vmem:[%s0 + $0xa4] sm:$0xf]
      %v363 = vld [vmem:[%s0 + $0xa8] sm:$0xf]
      %v364 = vld [vmem:[%s0 + $0xac] sm:$0xf]
      %v365 = vld [vmem:[%s0 + $0xb0] sm:$0xf]
      %v366 = vld [vmem:[%s0 + $0xb4] sm:$0xf]
      %v367 = vld [vmem:[%s0 + $0xb8] sm:$0xf]
      %v368 = vld [vmem:[%s0 + $0xbc] sm:$0xf]
      %v369 = vld [vmem:[%s0 + $0xc0] sm:$0xf]
      %v370 = vld [vmem:[%s0 + $0xc4] sm:$0xf]
      %v371 = vld [vmem:[%s0 + $0xc8] sm:$0xf]
      %v372 = vld [vmem:[%s0 + $0xcc] sm:$0xf]
      %v373 = vld [vmem:[%s0 + $0xd0] sm:$0xf]
      %v374 = vld [vmem:[%s0 + $0xd4] sm:$0xf]
      %v375 = vld [vmem:[%s0 + $0xd8] sm:$0xf]
      %v376 = vld [vmem:[%s0 + $0xdc] sm:$0xf]
      %v377 = vld [vmem:[%s0 + $0xe0] sm:$0xf]
      %v378 = vld [vmem:[%s0 + $0xe4] sm:$0xf]
      %v379 = vld [vmem:[%s0 + $0xe8] sm:$0xf]
      %v380 = vld [vmem:[%s0 + $0xec] sm:$0xf]
      %v381 = vld [vmem:[%s0 + $0xf0] sm:$0xf]
      %v382 = vld [vmem:[%s0 + $0xf4] sm:$0xf]
      %v383 = vld [vmem:[%s0 + $0xf8] sm:$0xf]
      %v384 = vld [vmem:[%s0 + $0xfc] sm:$0xf]
      %v385 = vld [vmem:[%s0 + $0x100] sm:$0xf]
      %v386 = vld [vmem:[%s0 + $0x104] sm:$0xf]
      %v387 = vld [vmem:[%s0 + $0x108] sm:$0xf]
      %v388 = vld [vmem:[%s0 + $0x10c] sm:$0xf]
      %v389 = vld [vmem:[%s0 + $0x110] sm:$0xf]
      %v390 = vld [vmem:[%s0 + $0x114] sm:$0xf]
      %v391 = vld [vmem:[%s0 + $0x118] sm:$0xf]
      %v392 = vld [vmem:[%s0 + $0x11c] sm:$0xf]
      %v393 = vld [vmem:[%s0 + $0x120] sm:$0xf]
      %v394 = vld [vmem:[%s0 + $0x124] sm:$0xf]
      %v395 = vld [vmem:[%s0 + $0x128] sm:$0xf]
      %v396 = vld [vmem:[%s0 + $0x12c] sm:$0xf]
      %v397 = vld [vmem:[%s0 + $0x130] sm:$0xf]
      %v398 = vld [vmem:[%s0 + $0x134] sm:$0xf]
      %v399 = vld [vmem:[%s0 + $0x138] sm:$0xf]
      %v400 = vld [vmem:[%s0 + $0x13c] sm:$0xf]
      %v401 = vld [vmem:[%s0 + $0x140] sm:$0xf]
      %v402 = vld [vmem:[%s0 + $0x144] sm:$0xf]
      %v403 = vld [vmem:[%s0 + $0x148] sm:$0xf]
      %v404 = vld [vmem:[%s0 + $0x14c] sm:$0xf]
      %v405 = vld [vmem:[%s0 + $0x150] sm:$0xf]
      %v406 = vld [vmem:[%s0 + $0x154] sm:$0xf]
      %v407 = vld [vmem:[%s0 + $0x158] sm:$0xf]
      %v408 = vld [vmem:[%s0 + $0x15c] sm:$0xf]
      %v409 = vld [vmem:[%s0 + $0x160] sm:$0xf]
      %v410 = vld [vmem:[%s0 + $0x164] sm:$0xf]
      %v411 = vld [vmem:[%s0 + $0x168] sm:$0xf]
      %v412 = vld [vmem:[%s0 + $0x16c] sm:$0xf]
      %v413 = vld [vmem:[%s0 + $0x170] sm:$0xf]
      %v414 = vld [vmem:[%s0 + $0x174] sm:$0xf]
      %v415 = vld [vmem:[%s0 + $0x178] sm:$0xf]
      %v416 = vld [vmem:[%s0 + $0x17c] sm:$0xf]
      %v417 = vld [vmem:[%s0 + $0x180] sm:$0xf]
      %v418 = vld [vmem:[%s0 + $0x184] sm:$0xf]
      %v419 = vld [vmem:[%s0 + $0x188] sm:$0xf]
      %v420 = vld [vmem:[%s0 + $0x18c] sm:$0xf]
      %v421 = vld [vmem:[%s0 + $0x190] sm:$0xf]
      %v422 = vld [vmem:[%s0 + $0x194] sm:$0xf]
      %v423 = vld [vmem:[%s0 + $0x198] sm:$0xf]
      %v424 = vld [vmem:[%s0 + $0x19c] sm:$0xf]
      %v425 = vld [vmem:[%s0 + $0x1a0] sm:$0xf]
      %v426 = vld [vmem:[%s0 + $0x1a4] sm:$0xf]
      %v427 = vld [vmem:[%s0 + $0x1a8] sm:$0xf]
      %v428 = vld [vmem:[%s0 + $0x1ac] sm:$0xf]
      %v429 = vld [vmem:[%s0 + $0x1b0] sm:$0xf]
      %v430 = vld [vmem:[%s0 + $0x1b4] sm:$0xf]
      %v431 = vld [vmem:[%s0 + $0x1b8] sm:$0xf]
      %v432 = vld [vmem:[%s0 + $0x1bc] sm:$0xf]
      %v433 = vld [vmem:[%s0 + $0x1c0] sm:$0xf]
      %v434 = vld [vmem:[%s0 + $0x1c4] sm:$0xf]
      %v435 = vld [vmem:[%s0 + $0x1c8] sm:$0xf]
      %v436 = vld [vmem:[%s0 + $0x1cc] sm:$0xf]
      %v437 = vld [vmem:[%s0 + $0x1d0] sm:$0xf]
      %v438 = vld [vmem:[%s0 + $0x1d4] sm:$0xf]
      %v439 = vld [vmem:[%s0 + $0x1d8] sm:$0xf]
      %v440 = vld [vmem:[%s0 + $0x1dc] sm:$0xf]
      %v441 = vld [vmem:[%s0 + $0x1e0] sm:$0xf]
      %v442 = vld [vmem:[%s0 + $0x1e4] sm:$0xf]
      %v443 = vld [vmem:[%s0 + $0x1e8] sm:$0xf]
      %v444 = vld [vmem:[%s0 + $0x1ec] sm:$0xf]
      %v445 = vld [vmem:[%s0 + $0x1f0] sm:$0xf]
      %v446 = vld [vmem:[%s0 + $0x1f4] sm:$0xf]
      %v447 = vld [vmem:[%s0 + $0x1f8] sm:$0xf]
      %v448 = vld [vmem:[%s0 + $0x1fc] sm:$0xf]
      %v449 = vld [vmem:[%s0 + $0x200] sm:$0xf]
      %v450 = vld [vmem:[%s0 + $0x204] sm:$0xf]
      %v451 = vld [vmem:[%s0 + $0x208] sm:$0xf]
      %v452 = vld [vmem:[%s0 + $0x20c] sm:$0xf]
      %v453 = vld [vmem:[%s0 + $0x210] sm:$0xf]
      %v454 = vld [vmem:[%s0 + $0x214] sm:$0xf]
      %v455 = vld [vmem:[%s0 + $0x218] sm:$0xf]
      %v456 = vld [vmem:[%s0 + $0x21c] sm:$0xf]
      %v457 = vld [vmem:[%s0 + $0x220] sm:$0xf]
      %v458 = vld [vmem:[%s0 + $0x224] sm:$0xf]
      %v459 = vld [vmem:[%s0 + $0x228] sm:$0xf]
      %v460 = vld [vmem:[%s0 + $0x22c] sm:$0xf]
      %v461 = vld [vmem:[%s0 + $0x230] sm:$0xf]
      %v462 = vld [vmem:[%s0 + $0x234] sm:$0xf]
      %v463 = vld [vmem:[%s0 + $0x238] sm:$0xf]
      %v464 = vld [vmem:[%s0 + $0x23c] sm:$0xf]
      %v465 = vld [vmem:[%s0 + $0x240] sm:$0xf]
      %v466 = vld [vmem:[%s0 + $0x244] sm:$0xf]
      %v467 = vld [vmem:[%s0 + $0x248] sm:$0xf]
      %v468 = vld [vmem:[%s0 + $0x24c] sm:$0xf]
      %v469 = vld [vmem:[%s0 + $0x250] sm:$0xf]
      %v470 = vld [vmem:[%s0 + $0x254] sm:$0xf]
      %v471 = vld [vmem:[%s0 + $0x258] sm:$0xf]
      %v472 = vld [vmem:[%s0 + $0x25c] sm:$0xf]
      %v473 = vld [vmem:[%s0 + $0x260] sm:$0xf]
      %v474 = vld [vmem:[%s0 + $0x264] sm:$0xf]
      %v475 = vld [vmem:[%s0 + $0x268] sm:$0xf]
      %v476 = vld [vmem:[%s0 + $0x26c] sm:$0xf]
      %v477 = vld [vmem:[%s0 + $0x270] sm:$0xf]
      %v478 = vld [vmem:[%s0 + $0x274] sm:$0xf]
      %v479 = vld [vmem:[%s0 + $0x278] sm:$0xf]
      %v480 = vld [vmem:[%s0 + $0x27c] sm:$0xf]
      %v481 = vld [vmem:[%s0 + $0x280] sm:$0xf]
      %v482 = vld [vmem:[%s0 + $0x284] sm:$0xf]
      %v483 = vld [vmem:[%s0 + $0x288] sm:$0xf]
      %v484 = vld [vmem:[%s0 + $0x28c] sm:$0xf]
      %v485 = vld [vmem:[%s0 + $0x290] sm:$0xf]
      %v486 = vld [vmem:[%s0 + $0x294] sm:$0xf]
      %v487 = vld [vmem:[%s0 + $0x298] sm:$0xf]
      %v488 = vld [vmem:[%s0 + $0x29c] sm:$0xf]
      %v489 = vld [vmem:[%s0 + $0x2a0] sm:$0xf]
      %v490 = vld [vmem:[%s0 + $0x2a4] sm:$0xf]
      %v491 = vld [vmem:[%s0 + $0x2a8] sm:$0xf]
      %v492 = vld [vmem:[%s0 + $0x2ac] sm:$0xf]
      %v493 = vld [vmem:[%s0 + $0x2b0] sm:$0xf]
      %v494 = vld [vmem:[%s0 + $0x2b4] sm:$0xf]
      %v495 = vld [vmem:[%s0 + $0x2b8] sm:$0xf]
      %v496 = vld [vmem:[%s0 + $0x2bc] sm:$0xf]
      %v497 = vld [vmem:[%s0 + $0x2c0] sm:$0xf]
      %v498 = vld [vmem:[%s0 + $0x2c4] sm:$0xf]
      %v499 = vld [vmem:[%s0 + $0x2c8] sm:$0xf]
      %v500 = vld [vmem:[%s0 + $0x2cc] sm:$0xf]
      %v501 = vld [vmem:[%s0 + $0x2d0] sm:$0xf]
      %v502 = vld [vmem:[%s0 + $0x2d4] sm:$0xf]
      %v503 = vld [vmem:[%s0 + $0x2d8] sm:$0xf]
      %v504 = vld [vmem:[%s0 + $0x2dc] sm:$0xf]
      %v505 = vld [vmem:[%s0 + $0x2e0] sm:$0xf]
      %v506 = vld [vmem:[%s0 + $0x2e4] sm:$0xf]
      %v507 = vld [vmem:[%s0 + $0x2e8] sm:$0xf]
      %v508 = vld [vmem:[%s0 + $0x2ec] sm:$0xf]
      %v509 = vld [vmem:[%s0 + $0x2f0] sm:$0xf]
      %v510 = vld [vmem:[%s0 + $0x2f4] sm:$0xf]
      %v511 = vld [vmem:[%s0 + $0x2f8] sm:$0xf]
      %v512 = vld [vmem:[%s0 + $0x2fc] sm:$0xf]
      %v513 = vld [vmem:[%s0 + $0x300] sm:$0xf]
      %v514 = vld [vmem:[%s0 + $0x304] sm:$0xf]
      %v515 = vld [vmem:[%s0 + $0x308] sm:$0xf]
      %v516 = vld [vmem:[%s0 + $0x30c] sm:$0xf]
      %v517 = vld [vmem:[%s0 + $0x310] sm:$0xf]
      %v518 = vld [vmem:[%s0 + $0x314] sm:$0xf]
      %v519 = vld [vmem:[%s0 + $0x318] sm:$0xf]
      %v520 = vld [vmem:[%s0 + $0x31c] sm:$0xf]
      %v521 = vld [vmem:[%s0 + $0x320] sm:$0xf]
      %v522 = vld [vmem:[%s0 + $0x324] sm:$0xf]
      %v523 = vld [vmem:[%s0 + $0x328] sm:$0xf]
      %v524 = vld [vmem:[%s0 + $0x32c] sm:$0xf]
      %v525 = vld [vmem:[%s0 + $0x330] sm:$0xf]
      %v526 = vld [vmem:[%s0 + $0x334] sm:$0xf]
      %v527 = vld [vmem:[%s0 + $0x338] sm:$0xf]
      %v528 = vld [vmem:[%s0 + $0x33c] sm:$0xf]
      %v529 = vld [vmem:[%s0 + $0x340] sm:$0xf]
      %v530 = vld [vmem:[%s0 + $0x344] sm:$0xf]
      %v531 = vld [vmem:[%s0 + $0x348] sm:$0xf]
      %v532 = vld [vmem:[%s0 + $0x34c] sm:$0xf]
      %v533 = vld [vmem:[%s0 + $0x350] sm:$0xf]
      %v534 = vld [vmem:[%s0 + $0x354] sm:$0xf]
      %v535 = vld [vmem:[%s0 + $0x358] sm:$0xf]
      %v536 = vld [vmem:[%s0 + $0x35c] sm:$0xf]
      %v537 = vld [vmem:[%s0 + $0x360] sm:$0xf]
      %v538 = vld [vmem:[%s0 + $0x364] sm:$0xf]
      %v539 = vld [vmem:[%s0 + $0x368] sm:$0xf]
      %v540 = vld [vmem:[%s0 + $0x36c] sm:$0xf]
      %v541 = vld [vmem:[%s0 + $0x370] sm:$0xf]
      %v542 = vld [vmem:[%s0 + $0x374] sm:$0xf]
      %v543 = vld [vmem:[%s0 + $0x378] sm:$0xf]
      %v544 = vld [vmem:[%s0 + $0x37c] sm:$0xf]
      %v545 = vld [vmem:[%s0 + $0x380] sm:$0xf]
      %v546 = vld [vmem:[%s0 + $0x384] sm:$0xf]
      %v547 = vld [vmem:[%s0 + $0x388] sm:$0xf]
      %v548 = vld [vmem:[%s0 + $0x38c] sm:$0xf]
      %v549 = vld [vmem:[%s0 + $0x390] sm:$0xf]
      %v550 = vld [vmem:[%s0 + $0x394] sm:$0xf]
      %v551 = vld [vmem:[%s0 + $0x398] sm:$0xf]
      %v552 = vld [vmem:[%s0 + $0x39c] sm:$0xf]
      %v553 = vld [vmem:[%s0 + $0x3a0] sm:$0xf]
      %v554 = vld [vmem:[%s0 + $0x3a4] sm:$0xf]
      %v555 = vld [vmem:[%s0 + $0x3a8] sm:$0xf]
      %v556 = vld [vmem:[%s0 + $0x3ac] sm:$0xf]
      %v557 = vld [vmem:[%s0 + $0x3b0] sm:$0xf]
      %v558 = vld [vmem:[%s0 + $0x3b4] sm:$0xf]
      %v559 = vld [vmem:[%s0 + $0x3b8] sm:$0xf]
      %v560 = vld [vmem:[%s0 + $0x3bc] sm:$0xf]
      %v561 = vld [vmem:[%s0 + $0x3c0] sm:$0xf]
      %v562 = vld [vmem:[%s0 + $0x3c4] sm:$0xf]
      %v563 = vld [vmem:[%s0 + $0x3c8] sm:$0xf]
      %v564 = vld [vmem:[%s0 + $0x3cc] sm:$0xf]
      %v565 = vld [vmem:[%s0 + $0x3d0] sm:$0xf]
      %v566 = vld [vmem:[%s0 + $0x3d4] sm:$0xf]
      %v567 = vld [vmem:[%s0 + $0x3d8] sm:$0xf]
      %v568 = vld [vmem:[%s0 + $0x3dc] sm:$0xf]
      %v569 = vld [vmem:[%s0 + $0x3e0] sm:$0xf]
      %v570 = vld [vmem:[%s0 + $0x3e4] sm:$0xf]
      %v571 = vld [vmem:[%s0 + $0x3e8] sm:$0xf]
      %v572 = vld [vmem:[%s0 + $0x3ec] sm:$0xf]
      %v573 = vld [vmem:[%s0 + $0x3f0] sm:$0xf]
      %v574 = vld [vmem:[%s0 + $0x3f4] sm:$0xf]
      %v575 = vld [vmem:[%s0 + $0x3f8] sm:$0xf]
      %v576 = vld [vmem:[%s0 + $0x3fc] sm:$0xf]
      %v649 = vunpack.c.l.b16 %v249
      %v650 = vunpack.c.h.b16 %v249
      %v651 = vunpack.c.l.b16 %v250
      %v652 = vunpack.c.h.b16 %v250
      %v653 = vunpack.c.l.b16 %v251
      %v654 = vunpack.c.h.b16 %v251
      %v655 = vunpack.c.l.b16 %v252
      %v656 = vunpack.c.h.b16 %v252
      %v657 = vunpack.c.l.b16 %v253
      %v658 = vunpack.c.h.b16 %v253
      %v659 = vunpack.c.l.b16 %v254
      %v660 = vunpack.c.h.b16 %v254
      %v661 = vunpack.c.l.b16 %v255
      %v662 = vunpack.c.h.b16 %v255
      %v663 = vunpack.c.l.b16 %v256
      %v664 = vunpack.c.h.b16 %v256
      %v665 = vunpack.c.l.b16 %v257
      %v666 = vunpack.c.h.b16 %v257
      %v667 = vunpack.c.l.b16 %v258
      %v668 = vunpack.c.h.b16 %v258
      %v669 = vunpack.c.l.b16 %v259
      %v670 = vunpack.c.h.b16 %v259
      %v671 = vunpack.c.l.b16 %v260
      %v672 = vunpack.c.h.b16 %v260
      %v673 = vunpack.c.l.b16 %v261
      %v674 = vunpack.c.h.b16 %v261
      %v675 = vunpack.c.l.b16 %v262
      %v676 = vunpack.c.h.b16 %v262
      %v677 = vunpack.c.l.b16 %v263
      %v678 = vunpack.c.h.b16 %v263
      %v679 = vunpack.c.l.b16 %v264
      %v680 = vunpack.c.h.b16 %v264
      %v681 = vunpack.c.l.b16 %v265
      %v682 = vunpack.c.h.b16 %v265
      %v683 = vunpack.c.l.b16 %v266
      %v684 = vunpack.c.h.b16 %v266
      %v685 = vunpack.c.l.b16 %v267
      %v686 = vunpack.c.h.b16 %v267
      %v687 = vunpack.c.l.b16 %v268
      %v688 = vunpack.c.h.b16 %v268
      %v689 = vunpack.c.l.b16 %v269
      %v690 = vunpack.c.h.b16 %v269
      %v691 = vunpack.c.l.b16 %v270
      %v692 = vunpack.c.h.b16 %v270
      %v693 = vunpack.c.l.b16 %v271
      %v694 = vunpack.c.h.b16 %v271
      %v695 = vunpack.c.l.b16 %v272
      %v696 = vunpack.c.h.b16 %v272
      %v697 = vunpack.c.l.b16 %v273
      %v698 = vunpack.c.h.b16 %v273
      %v699 = vunpack.c.l.b16 %v274
      %v700 = vunpack.c.h.b16 %v274
      %v701 = vunpack.c.l.b16 %v275
      %v702 = vunpack.c.h.b16 %v275
      %v703 = vunpack.c.l.b16 %v276
      %v704 = vunpack.c.h.b16 %v276
      %v705 = vunpack.c.l.b16 %v277
      %v706 = vunpack.c.h.b16 %v277
      %v707 = vunpack.c.l.b16 %v278
      %v708 = vunpack.c.h.b16 %v278
      %v709 = vunpack.c.l.b16 %v279
      %v710 = vunpack.c.h.b16 %v279
      %v711 = vunpack.c.l.b16 %v280
      %v712 = vunpack.c.h.b16 %v280
      %v713 = vunpack.c.l.b16 %v281
      %v714 = vunpack.c.h.b16 %v281
      %v715 = vunpack.c.l.b16 %v282
      %v716 = vunpack.c.h.b16 %v282
      %v717 = vunpack.c.l.b16 %v283
      %v718 = vunpack.c.h.b16 %v283
      %v719 = vunpack.c.l.b16 %v284
      %v720 = vunpack.c.h.b16 %v284
      %v721 = vunpack.c.l.b16 %v285
      %v722 = vunpack.c.h.b16 %v285
      %v723 = vunpack.c.l.b16 %v286
      %v724 = vunpack.c.h.b16 %v286
      %v725 = vunpack.c.l.b16 %v287
      %v726 = vunpack.c.h.b16 %v287
      %v727 = vunpack.c.l.b16 %v288
      %v728 = vunpack.c.h.b16 %v288
      %v729 = vunpack.c.l.b16 %v289
      %v730 = vunpack.c.h.b16 %v289
      %v731 = vunpack.c.l.b16 %v290
      %v732 = vunpack.c.h.b16 %v290
      %v733 = vunpack.c.l.b16 %v291
      %v734 = vunpack.c.h.b16 %v291
      %v735 = vunpack.c.l.b16 %v292
      %v736 = vunpack.c.h.b16 %v292
      %v737 = vunpack.c.l.b16 %v293
      %v738 = vunpack.c.h.b16 %v293
      %v739 = vunpack.c.l.b16 %v294
      %v740 = vunpack.c.h.b16 %v294
      %v741 = vunpack.c.l.b16 %v295
      %v742 = vunpack.c.h.b16 %v295
      %v743 = vunpack.c.l.b16 %v296
      %v744 = vunpack.c.h.b16 %v296
      %v745 = vunpack.c.l.b16 %v297
      %v746 = vunpack.c.h.b16 %v297
      %v747 = vunpack.c.l.b16 %v298
      %v748 = vunpack.c.h.b16 %v298
      %v749 = vunpack.c.l.b16 %v299
      %v750 = vunpack.c.h.b16 %v299
      %v751 = vunpack.c.l.b16 %v300
      %v752 = vunpack.c.h.b16 %v300
      %v753 = vunpack.c.l.b16 %v301
      %v754 = vunpack.c.h.b16 %v301
      %v755 = vunpack.c.l.b16 %v302
      %v756 = vunpack.c.h.b16 %v302
      %v757 = vunpack.c.l.b16 %v303
      %v758 = vunpack.c.h.b16 %v303
      %v759 = vunpack.c.l.b16 %v304
      %v760 = vunpack.c.h.b16 %v304
      %v761 = vunpack.c.l.b16 %v305
      %v762 = vunpack.c.h.b16 %v305
      %v763 = vunpack.c.l.b16 %v306
      %v764 = vunpack.c.h.b16 %v306
      %v765 = vunpack.c.l.b16 %v307
      %v766 = vunpack.c.h.b16 %v307
      %v767 = vunpack.c.l.b16 %v308
      %v768 = vunpack.c.h.b16 %v308
      %v769 = vunpack.c.l.b16 %v309
      %v770 = vunpack.c.h.b16 %v309
      %v771 = vunpack.c.l.b16 %v310
      %v772 = vunpack.c.h.b16 %v310
      %v773 = vunpack.c.l.b16 %v311
      %v774 = vunpack.c.h.b16 %v311
      %v775 = vunpack.c.l.b16 %v312
      %v776 = vunpack.c.h.b16 %v312
      %v777 = vunpack.c.l.b16 %v313
      %v778 = vunpack.c.h.b16 %v313
      %v779 = vunpack.c.l.b16 %v314
      %v780 = vunpack.c.h.b16 %v314
      %v781 = vunpack.c.l.b16 %v315
      %v782 = vunpack.c.h.b16 %v315
      %v783 = vunpack.c.l.b16 %v316
      %v784 = vunpack.c.h.b16 %v316
      %v785 = vunpack.c.l.b16 %v317
      %v786 = vunpack.c.h.b16 %v317
      %v787 = vunpack.c.l.b16 %v318
      %v788 = vunpack.c.h.b16 %v318
      %v789 = vunpack.c.l.b16 %v319
      %v790 = vunpack.c.h.b16 %v319
      %v791 = vunpack.c.l.b16 %v320
      %v792 = vunpack.c.h.b16 %v320
      %v793 = vpack.c.b16 %v665, %v649
      %v794 = vpack.c.b16 %v666, %v650
      %v795 = vpack.c.b16 %v667, %v651
      %v796 = vpack.c.b16 %v668, %v652
      %v797 = vpack.c.b16 %v669, %v653
      %v798 = vpack.c.b16 %v670, %v654
      %v799 = vpack.c.b16 %v671, %v655
      %v800 = vpack.c.b16 %v672, %v656
      %v801 = vpack.c.b16 %v673, %v657
      %v802 = vpack.c.b16 %v674, %v658
      %v803 = vpack.c.b16 %v675, %v659
      %v804 = vpack.c.b16 %v676, %v660
      %v805 = vpack.c.b16 %v677, %v661
      %v806 = vpack.c.b16 %v678, %v662
      %v807 = vpack.c.b16 %v679, %v663
      %v808 = vpack.c.b16 %v680, %v664
      %v809 = vpack.c.b16 %v697, %v681
      %v810 = vpack.c.b16 %v698, %v682
      %v811 = vpack.c.b16 %v699, %v683
      %v812 = vpack.c.b16 %v700, %v684
      %v813 = vpack.c.b16 %v701, %v685
      %v814 = vpack.c.b16 %v702, %v686
      %v815 = vpack.c.b16 %v703, %v687
      %v816 = vpack.c.b16 %v704, %v688
      %v817 = vpack.c.b16 %v705, %v689
      %v818 = vpack.c.b16 %v706, %v690
      %v819 = vpack.c.b16 %v707, %v691
      %v820 = vpack.c.b16 %v708, %v692
      %v821 = vpack.c.b16 %v709, %v693
      %v822 = vpack.c.b16 %v710, %v694
      %v823 = vpack.c.b16 %v711, %v695
      %v824 = vpack.c.b16 %v712, %v696
      %v825 = vpack.c.b16 %v729, %v713
      %v826 = vpack.c.b16 %v730, %v714
      %v827 = vpack.c.b16 %v731, %v715
      %v828 = vpack.c.b16 %v732, %v716
      %v829 = vpack.c.b16 %v733, %v717
      %v830 = vpack.c.b16 %v734, %v718
      %v831 = vpack.c.b16 %v735, %v719
      %v832 = vpack.c.b16 %v736, %v720
      %v833 = vpack.c.b16 %v737, %v721
      %v834 = vpack.c.b16 %v738, %v722
      %v835 = vpack.c.b16 %v739, %v723
      %v836 = vpack.c.b16 %v740, %v724
      %v837 = vpack.c.b16 %v741, %v725
      %v838 = vpack.c.b16 %v742, %v726
      %v839 = vpack.c.b16 %v743, %v727
      %v840 = vpack.c.b16 %v744, %v728
      %v841 = vpack.c.b16 %v761, %v745
      %v842 = vpack.c.b16 %v762, %v746
      %v843 = vpack.c.b16 %v763, %v747
      %v844 = vpack.c.b16 %v764, %v748
      %v845 = vpack.c.b16 %v765, %v749
      %v846 = vpack.c.b16 %v766, %v750
      %v847 = vpack.c.b16 %v767, %v751
      %v848 = vpack.c.b16 %v768, %v752
      %v849 = vpack.c.b16 %v769, %v753
      %v850 = vpack.c.b16 %v770, %v754
      %v851 = vpack.c.b16 %v771, %v755
      %v852 = vpack.c.b16 %v772, %v756
      %v853 = vpack.c.b16 %v773, %v757
      %v854 = vpack.c.b16 %v774, %v758
      %v855 = vpack.c.b16 %v775, %v759
      %v856 = vpack.c.b16 %v776, %v760
      %v857 = vpack.c.b16 %v777, %v777
      %v858 = vpack.c.b16 %v778, %v778
      %v859 = vpack.c.b16 %v779, %v779
      %v860 = vpack.c.b16 %v780, %v780
      %v861 = vpack.c.b16 %v781, %v781
      %v862 = vpack.c.b16 %v782, %v782
      %v863 = vpack.c.b16 %v783, %v783
      %v864 = vpack.c.b16 %v784, %v784
      %v865 = vpack.c.b16 %v785, %v785
      %v866 = vpack.c.b16 %v786, %v786
      %v867 = vpack.c.b16 %v787, %v787
      %v868 = vpack.c.b16 %v788, %v788
      %v869 = vpack.c.b16 %v789, %v789
      %v870 = vpack.c.b16 %v790, %v790
      %v871 = vpack.c.b16 %v791, %v791
      %v872 = vpack.c.b16 %v792, %v792
      %v1209 = vunpack.c.l.b16 %v321
      %v1210 = vunpack.c.l.b16 %v322
      %v1211 = vunpack.c.l.b16 %v323
      %v1212 = vunpack.c.l.b16 %v324
      %v1213 = vunpack.c.l.b16 %v325
      %v1214 = vunpack.c.l.b16 %v326
      %v1215 = vunpack.c.l.b16 %v327
      %v1216 = vunpack.c.l.b16 %v328
      %v1217 = vunpack.c.l.b16 %v329
      %v1218 = vunpack.c.l.b16 %v330
      %v1219 = vunpack.c.l.b16 %v331
      %v1220 = vunpack.c.l.b16 %v332
      %v1221 = vunpack.c.l.b16 %v333
      %v1222 = vunpack.c.l.b16 %v334
      %v1223 = vunpack.c.l.b16 %v335
      %v1224 = vunpack.c.l.b16 %v336
      %v1225 = vunpack.c.l.b16 %v337
      %v1226 = vunpack.c.l.b16 %v338
      %v1227 = vunpack.c.l.b16 %v339
      %v1228 = vunpack.c.l.b16 %v340
      %v1229 = vunpack.c.l.b16 %v341
      %v1230 = vunpack.c.l.b16 %v342
      %v1231 = vunpack.c.l.b16 %v343
      %v1232 = vunpack.c.l.b16 %v344
      %v1233 = vunpack.c.l.b16 %v345
      %v1234 = vunpack.c.l.b16 %v346
      %v1235 = vunpack.c.l.b16 %v347
      %v1236 = vunpack.c.l.b16 %v348
      %v1237 = vunpack.c.l.b16 %v349
      %v1238 = vunpack.c.l.b16 %v350
      %v1239 = vunpack.c.l.b16 %v351
      %v1240 = vunpack.c.l.b16 %v352
      %v1241 = vunpack.c.l.b16 %v353
      %v1242 = vunpack.c.l.b16 %v354
      %v1243 = vunpack.c.l.b16 %v355
      %v1244 = vunpack.c.l.b16 %v356
      %v1245 = vunpack.c.l.b16 %v357
      %v1246 = vunpack.c.l.b16 %v358
      %v1247 = vunpack.c.l.b16 %v359
      %v1248 = vunpack.c.l.b16 %v360
      %v1249 = vunpack.c.l.b16 %v361
      %v1250 = vunpack.c.l.b16 %v362
      %v1251 = vunpack.c.l.b16 %v363
      %v1252 = vunpack.c.l.b16 %v364
      %v1253 = vunpack.c.l.b16 %v365
      %v1254 = vunpack.c.l.b16 %v366
      %v1255 = vunpack.c.l.b16 %v367
      %v1256 = vunpack.c.l.b16 %v368
      %v1257 = vunpack.c.l.b16 %v369
      %v1258 = vunpack.c.l.b16 %v370
      %v1259 = vunpack.c.l.b16 %v371
      %v1260 = vunpack.c.l.b16 %v372
      %v1261 = vunpack.c.l.b16 %v373
      %v1262 = vunpack.c.l.b16 %v374
      %v1263 = vunpack.c.l.b16 %v375
      %v1264 = vunpack.c.l.b16 %v376
      %v1265 = vunpack.c.l.b16 %v377
      %v1266 = vunpack.c.l.b16 %v378
      %v1267 = vunpack.c.l.b16 %v379
      %v1268 = vunpack.c.l.b16 %v380
      %v1269 = vunpack.c.l.b16 %v381
      %v1270 = vunpack.c.l.b16 %v382
      %v1271 = vunpack.c.l.b16 %v383
      %v1272 = vunpack.c.l.b16 %v384
      %v1273 = vunpack.c.l.b16 %v385
      %v1274 = vunpack.c.l.b16 %v386
      %v1275 = vunpack.c.l.b16 %v387
      %v1276 = vunpack.c.l.b16 %v388
      %v1277 = vunpack.c.l.b16 %v389
      %v1278 = vunpack.c.l.b16 %v390
      %v1279 = vunpack.c.l.b16 %v391
      %v1280 = vunpack.c.l.b16 %v392
      %v1281 = vunpack.c.l.b16 %v393
      %v1282 = vunpack.c.l.b16 %v394
      %v1283 = vunpack.c.l.b16 %v395
      %v1284 = vunpack.c.l.b16 %v396
      %v1285 = vunpack.c.l.b16 %v397
      %v1286 = vunpack.c.l.b16 %v398
      %v1287 = vunpack.c.l.b16 %v399
      %v1288 = vunpack.c.l.b16 %v400
      %v1289 = vunpack.c.l.b16 %v401
      %v1290 = vunpack.c.l.b16 %v402
      %v1291 = vunpack.c.l.b16 %v403
      %v1292 = vunpack.c.l.b16 %v404
      %v1293 = vunpack.c.l.b16 %v405
      %v1294 = vunpack.c.l.b16 %v406
      %v1295 = vunpack.c.l.b16 %v407
      %v1296 = vunpack.c.l.b16 %v408
      %v1297 = vunpack.c.l.b16 %v409
      %v1298 = vunpack.c.l.b16 %v410
      %v1299 = vunpack.c.l.b16 %v411
      %v1300 = vunpack.c.l.b16 %v412
      %v1301 = vunpack.c.l.b16 %v413
      %v1302 = vunpack.c.l.b16 %v414
      %v1303 = vunpack.c.l.b16 %v415
      %v1304 = vunpack.c.l.b16 %v416
      %v1305 = vunpack.c.l.b16 %v417
      %v1306 = vunpack.c.l.b16 %v418
      %v1307 = vunpack.c.l.b16 %v419
      %v1308 = vunpack.c.l.b16 %v420
      %v1309 = vunpack.c.l.b16 %v421
      %v1310 = vunpack.c.l.b16 %v422
      %v1311 = vunpack.c.l.b16 %v423
      %v1312 = vunpack.c.l.b16 %v424
      %v1313 = vunpack.c.l.b16 %v425
      %v1314 = vunpack.c.l.b16 %v426
      %v1315 = vunpack.c.l.b16 %v427
      %v1316 = vunpack.c.l.b16 %v428
      %v1317 = vunpack.c.l.b16 %v429
      %v1318 = vunpack.c.l.b16 %v430
      %v1319 = vunpack.c.l.b16 %v431
      %v1320 = vunpack.c.l.b16 %v432
      %v1321 = vunpack.c.l.b16 %v433
      %v1322 = vunpack.c.l.b16 %v434
      %v1323 = vunpack.c.l.b16 %v435
      %v1324 = vunpack.c.l.b16 %v436
      %v1325 = vunpack.c.l.b16 %v437
      %v1326 = vunpack.c.l.b16 %v438
      %v1327 = vunpack.c.l.b16 %v439
      %v1328 = vunpack.c.l.b16 %v440
      %v1329 = vunpack.c.l.b16 %v441
      %v1330 = vunpack.c.l.b16 %v442
      %v1331 = vunpack.c.l.b16 %v443
      %v1332 = vunpack.c.l.b16 %v444
      %v1333 = vunpack.c.l.b16 %v445
      %v1334 = vunpack.c.l.b16 %v446
      %v1335 = vunpack.c.l.b16 %v447
      %v1336 = vunpack.c.l.b16 %v448
      %v1337 = vunpack.c.l.b16 %v449
      %v1338 = vunpack.c.l.b16 %v450
      %v1339 = vunpack.c.l.b16 %v451
      %v1340 = vunpack.c.l.b16 %v452
      %v1341 = vunpack.c.l.b16 %v453
      %v1342 = vunpack.c.l.b16 %v454
      %v1343 = vunpack.c.l.b16 %v455
      %v1344 = vunpack.c.l.b16 %v456
      %v1345 = vunpack.c.l.b16 %v457
      %v1346 = vunpack.c.l.b16 %v458
      %v1347 = vunpack.c.l.b16 %v459
      %v1348 = vunpack.c.l.b16 %v460
      %v1349 = vunpack.c.l.b16 %v461
      %v1350 = vunpack.c.l.b16 %v462
      %v1351 = vunpack.c.l.b16 %v463
      %v1352 = vunpack.c.l.b16 %v464
      %v1353 = vunpack.c.l.b16 %v465
      %v1354 = vunpack.c.l.b16 %v466
      %v1355 = vunpack.c.l.b16 %v467
      %v1356 = vunpack.c.l.b16 %v468
      %v1357 = vunpack.c.l.b16 %v469
      %v1358 = vunpack.c.l.b16 %v470
      %v1359 = vunpack.c.l.b16 %v471
      %v1360 = vunpack.c.l.b16 %v472
      %v1361 = vunpack.c.l.b16 %v473
      %v1362 = vunpack.c.l.b16 %v474
      %v1363 = vunpack.c.l.b16 %v475
      %v1364 = vunpack.c.l.b16 %v476
      %v1365 = vunpack.c.l.b16 %v477
      %v1366 = vunpack.c.l.b16 %v478
      %v1367 = vunpack.c.l.b16 %v479
      %v1368 = vunpack.c.l.b16 %v480
      %v1369 = vunpack.c.l.b16 %v481
      %v1370 = vunpack.c.l.b16 %v482
      %v1371 = vunpack.c.l.b16 %v483
      %v1372 = vunpack.c.l.b16 %v484
      %v1373 = vunpack.c.l.b16 %v485
      %v1374 = vunpack.c.l.b16 %v486
      %v1375 = vunpack.c.l.b16 %v487
      %v1376 = vunpack.c.l.b16 %v488
      %v1377 = vunpack.c.l.b16 %v489
      %v1378 = vunpack.c.l.b16 %v490
      %v1379 = vunpack.c.l.b16 %v491
      %v1380 = vunpack.c.l.b16 %v492
      %v1381 = vunpack.c.l.b16 %v493
      %v1382 = vunpack.c.l.b16 %v494
      %v1383 = vunpack.c.l.b16 %v495
      %v1384 = vunpack.c.l.b16 %v496
      %v1385 = vunpack.c.l.b16 %v497
      %v1386 = vunpack.c.l.b16 %v498
      %v1387 = vunpack.c.l.b16 %v499
      %v1388 = vunpack.c.l.b16 %v500
      %v1389 = vunpack.c.l.b16 %v501
      %v1390 = vunpack.c.l.b16 %v502
      %v1391 = vunpack.c.l.b16 %v503
      %v1392 = vunpack.c.l.b16 %v504
      %v1393 = vunpack.c.l.b16 %v505
      %v1394 = vunpack.c.l.b16 %v506
      %v1395 = vunpack.c.l.b16 %v507
      %v1396 = vunpack.c.l.b16 %v508
      %v1397 = vunpack.c.l.b16 %v509
      %v1398 = vunpack.c.l.b16 %v510
      %v1399 = vunpack.c.l.b16 %v511
      %v1400 = vunpack.c.l.b16 %v512
      %v1401 = vunpack.c.l.b16 %v513
      %v1402 = vunpack.c.l.b16 %v514
      %v1403 = vunpack.c.l.b16 %v515
      %v1404 = vunpack.c.l.b16 %v516
      %v1405 = vunpack.c.l.b16 %v517
      %v1406 = vunpack.c.l.b16 %v518
      %v1407 = vunpack.c.l.b16 %v519
      %v1408 = vunpack.c.l.b16 %v520
      %v1409 = vunpack.c.l.b16 %v521
      %v1410 = vunpack.c.l.b16 %v522
      %v1411 = vunpack.c.l.b16 %v523
      %v1412 = vunpack.c.l.b16 %v524
      %v1413 = vunpack.c.l.b16 %v525
      %v1414 = vunpack.c.l.b16 %v526
      %v1415 = vunpack.c.l.b16 %v527
      %v1416 = vunpack.c.l.b16 %v528
      %v1417 = vunpack.c.l.b16 %v529
      %v1418 = vunpack.c.l.b16 %v530
      %v1419 = vunpack.c.l.b16 %v531
      %v1420 = vunpack.c.l.b16 %v532
      %v1421 = vunpack.c.l.b16 %v533
      %v1422 = vunpack.c.l.b16 %v534
      %v1423 = vunpack.c.l.b16 %v535
      %v1424 = vunpack.c.l.b16 %v536
      %v1425 = vunpack.c.l.b16 %v537
      %v1426 = vunpack.c.l.b16 %v538
      %v1427 = vunpack.c.l.b16 %v539
      %v1428 = vunpack.c.l.b16 %v540
      %v1429 = vunpack.c.l.b16 %v541
      %v1430 = vunpack.c.l.b16 %v542
      %v1431 = vunpack.c.l.b16 %v543
      %v1432 = vunpack.c.l.b16 %v544
      %v1433 = vunpack.c.l.b16 %v545
      %v1434 = vunpack.c.l.b16 %v546
      %v1435 = vunpack.c.l.b16 %v547
      %v1436 = vunpack.c.l.b16 %v548
      %v1437 = vunpack.c.l.b16 %v549
      %v1438 = vunpack.c.l.b16 %v550
      %v1439 = vunpack.c.l.b16 %v551
      %v1440 = vunpack.c.l.b16 %v552
      %v1441 = vunpack.c.l.b16 %v553
      %v1442 = vunpack.c.l.b16 %v554
      %v1443 = vunpack.c.l.b16 %v555
      %v1444 = vunpack.c.l.b16 %v556
      %v1445 = vunpack.c.l.b16 %v557
      %v1446 = vunpack.c.l.b16 %v558
      %v1447 = vunpack.c.l.b16 %v559
      %v1448 = vunpack.c.l.b16 %v560
      %v1449 = vunpack.c.l.b16 %v561
      %v1450 = vunpack.c.l.b16 %v562
      %v1451 = vunpack.c.l.b16 %v563
      %v1452 = vunpack.c.l.b16 %v564
      %v1453 = vunpack.c.l.b16 %v565
      %v1454 = vunpack.c.l.b16 %v566
      %v1455 = vunpack.c.l.b16 %v567
      %v1456 = vunpack.c.l.b16 %v568
      %v1457 = vunpack.c.l.b16 %v569
      %v1458 = vunpack.c.l.b16 %v570
      %v1459 = vunpack.c.l.b16 %v571
      %v1460 = vunpack.c.l.b16 %v572
      %v1461 = vunpack.c.l.b16 %v573
      %v1462 = vunpack.c.l.b16 %v574
      %v1463 = vunpack.c.l.b16 %v575
      %v1464 = vunpack.c.l.b16 %v576
      %v1465 = vpack.c.b16 %v1210, %v1209
      %v1466 = vpack.c.b16 %v1212, %v1211
      %v1467 = vpack.c.b16 %v1214, %v1213
      %v1468 = vpack.c.b16 %v1216, %v1215
      %v1469 = vpack.c.b16 %v1218, %v1217
      %v1470 = vpack.c.b16 %v1220, %v1219
      %v1471 = vpack.c.b16 %v1222, %v1221
      %v1472 = vpack.c.b16 %v1224, %v1223
      %v1473 = vpack.c.b16 %v1226, %v1225
      %v1474 = vpack.c.b16 %v1228, %v1227
      %v1475 = vpack.c.b16 %v1230, %v1229
      %v1476 = vpack.c.b16 %v1232, %v1231
      %v1477 = vpack.c.b16 %v1234, %v1233
      %v1478 = vpack.c.b16 %v1236, %v1235
      %v1479 = vpack.c.b16 %v1238, %v1237
      %v1480 = vpack.c.b16 %v1240, %v1239
      %v1481 = vpack.c.b16 %v1242, %v1241
      %v1482 = vpack.c.b16 %v1244, %v1243
      %v1483 = vpack.c.b16 %v1246, %v1245
      %v1484 = vpack.c.b16 %v1248, %v1247
      %v1485 = vpack.c.b16 %v1250, %v1249
      %v1486 = vpack.c.b16 %v1252, %v1251
      %v1487 = vpack.c.b16 %v1254, %v1253
      %v1488 = vpack.c.b16 %v1256, %v1255
      %v1489 = vpack.c.b16 %v1258, %v1257
      %v1490 = vpack.c.b16 %v1260, %v1259
      %v1491 = vpack.c.b16 %v1262, %v1261
      %v1492 = vpack.c.b16 %v1264, %v1263
      %v1493 = vpack.c.b16 %v1266, %v1265
      %v1494 = vpack.c.b16 %v1268, %v1267
      %v1495 = vpack.c.b16 %v1270, %v1269
      %v1496 = vpack.c.b16 %v1272, %v1271
      %v1497 = vpack.c.b16 %v1274, %v1273
      %v1498 = vpack.c.b16 %v1276, %v1275
      %v1499 = vpack.c.b16 %v1278, %v1277
      %v1500 = vpack.c.b16 %v1280, %v1279
      %v1501 = vpack.c.b16 %v1282, %v1281
      %v1502 = vpack.c.b16 %v1284, %v1283
      %v1503 = vpack.c.b16 %v1286, %v1285
      %v1504 = vpack.c.b16 %v1288, %v1287
      %v1505 = vpack.c.b16 %v1290, %v1289
      %v1506 = vpack.c.b16 %v1292, %v1291
      %v1507 = vpack.c.b16 %v1294, %v1293
      %v1508 = vpack.c.b16 %v1296, %v1295
      %v1509 = vpack.c.b16 %v1298, %v1297
      %v1510 = vpack.c.b16 %v1300, %v1299
      %v1511 = vpack.c.b16 %v1302, %v1301
      %v1512 = vpack.c.b16 %v1304, %v1303
      %v1513 = vpack.c.b16 %v1306, %v1305
      %v1514 = vpack.c.b16 %v1308, %v1307
      %v1515 = vpack.c.b16 %v1310, %v1309
      %v1516 = vpack.c.b16 %v1312, %v1311
      %v1517 = vpack.c.b16 %v1314, %v1313
      %v1518 = vpack.c.b16 %v1316, %v1315
      %v1519 = vpack.c.b16 %v1318, %v1317
      %v1520 = vpack.c.b16 %v1320, %v1319
      %v1521 = vpack.c.b16 %v1322, %v1321
      %v1522 = vpack.c.b16 %v1324, %v1323
      %v1523 = vpack.c.b16 %v1326, %v1325
      %v1524 = vpack.c.b16 %v1328, %v1327
      %v1525 = vpack.c.b16 %v1330, %v1329
      %v1526 = vpack.c.b16 %v1332, %v1331
      %v1527 = vpack.c.b16 %v1334, %v1333
      %v1528 = vpack.c.b16 %v1336, %v1335
      %v1529 = vpack.c.b16 %v1338, %v1337
      %v1530 = vpack.c.b16 %v1340, %v1339
      %v1531 = vpack.c.b16 %v1342, %v1341
      %v1532 = vpack.c.b16 %v1344, %v1343
      %v1533 = vpack.c.b16 %v1346, %v1345
      %v1534 = vpack.c.b16 %v1348, %v1347
      %v1535 = vpack.c.b16 %v1350, %v1349
      %v1536 = vpack.c.b16 %v1352, %v1351
      %v1537 = vpack.c.b16 %v1354, %v1353
      %v1538 = vpack.c.b16 %v1356, %v1355
      %v1539 = vpack.c.b16 %v1358, %v1357
      %v1540 = vpack.c.b16 %v1360, %v1359
      %v1541 = vpack.c.b16 %v1362, %v1361
      %v1542 = vpack.c.b16 %v1364, %v1363
      %v1543 = vpack.c.b16 %v1366, %v1365
      %v1544 = vpack.c.b16 %v1368, %v1367
      %v1545 = vpack.c.b16 %v1370, %v1369
      %v1546 = vpack.c.b16 %v1372, %v1371
      %v1547 = vpack.c.b16 %v1374, %v1373
      %v1548 = vpack.c.b16 %v1376, %v1375
      %v1549 = vpack.c.b16 %v1378, %v1377
      %v1550 = vpack.c.b16 %v1380, %v1379
      %v1551 = vpack.c.b16 %v1382, %v1381
      %v1552 = vpack.c.b16 %v1384, %v1383
      %v1553 = vpack.c.b16 %v1386, %v1385
      %v1554 = vpack.c.b16 %v1388, %v1387
      %v1555 = vpack.c.b16 %v1390, %v1389
      %v1556 = vpack.c.b16 %v1392, %v1391
      %v1557 = vpack.c.b16 %v1394, %v1393
      %v1558 = vpack.c.b16 %v1396, %v1395
      %v1559 = vpack.c.b16 %v1398, %v1397
      %v1560 = vpack.c.b16 %v1400, %v1399
      %v1561 = vpack.c.b16 %v1402, %v1401
      %v1562 = vpack.c.b16 %v1404, %v1403
      %v1563 = vpack.c.b16 %v1406, %v1405
      %v1564 = vpack.c.b16 %v1408, %v1407
      %v1565 = vpack.c.b16 %v1410, %v1409
      %v1566 = vpack.c.b16 %v1412, %v1411
      %v1567 = vpack.c.b16 %v1414, %v1413
      %v1568 = vpack.c.b16 %v1416, %v1415
      %v1569 = vpack.c.b16 %v1418, %v1417
      %v1570 = vpack.c.b16 %v1420, %v1419
      %v1571 = vpack.c.b16 %v1422, %v1421
      %v1572 = vpack.c.b16 %v1424, %v1423
      %v1573 = vpack.c.b16 %v1426, %v1425
      %v1574 = vpack.c.b16 %v1428, %v1427
      %v1575 = vpack.c.b16 %v1430, %v1429
      %v1576 = vpack.c.b16 %v1432, %v1431
      %v1577 = vpack.c.b16 %v1434, %v1433
      %v1578 = vpack.c.b16 %v1436, %v1435
      %v1579 = vpack.c.b16 %v1438, %v1437
      %v1580 = vpack.c.b16 %v1440, %v1439
      %v1581 = vpack.c.b16 %v1442, %v1441
      %v1582 = vpack.c.b16 %v1444, %v1443
      %v1583 = vpack.c.b16 %v1446, %v1445
      %v1584 = vpack.c.b16 %v1448, %v1447
      %v1585 = vpack.c.b16 %v1450, %v1449
      %v1586 = vpack.c.b16 %v1452, %v1451
      %v1587 = vpack.c.b16 %v1454, %v1453
      %v1588 = vpack.c.b16 %v1456, %v1455
      %v1589 = vpack.c.b16 %v1458, %v1457
      %v1590 = vpack.c.b16 %v1460, %v1459
      %v1591 = vpack.c.b16 %v1462, %v1461
      %v1592 = vpack.c.b16 %v1464, %v1463
      %1721 = vmatprep.subr.bf16.mxu0 0
      %1722 = vmatpush1.bf16.msra.mxu0 %v1465
      %1723 = vmatprep.subr.bf16.mxu0 0
      %1724 = vmatpush1.bf16.msra.mxu0 %v1466
      %1725 = vmatprep.subr.bf16.mxu0 0
      %1726 = vmatpush1.bf16.msra.mxu0 %v1467
      %1727 = vmatprep.subr.bf16.mxu0 0
      %1728 = vmatpush1.bf16.msra.mxu0 %v1468
      %1729 = vmatprep.subr.bf16.mxu0 0
      %1730 = vmatpush1.bf16.msra.mxu0 %v1469
      %1731 = vmatprep.subr.bf16.mxu0 0
      %1732 = vmatpush1.bf16.msra.mxu0 %v1470
      %1733 = vmatprep.subr.bf16.mxu0 0
      %1734 = vmatpush1.bf16.msra.mxu0 %v1471
      %1735 = vmatprep.subr.bf16.mxu0 0
      %1736 = vmatpush1.bf16.msra.mxu0 %v1472
      %1737 = vmatprep.subr.bf16.mxu0 0
      %1738 = vmatpush1.bf16.msra.mxu0 %v1473
      %1739 = vmatprep.subr.bf16.mxu0 0
      %1740 = vmatpush1.bf16.msra.mxu0 %v1474
      %1741 = vmatprep.subr.bf16.mxu0 0
      %1742 = vmatpush1.bf16.msra.mxu0 %v1475
      %1743 = vmatprep.subr.bf16.mxu0 0
      %1744 = vmatpush1.bf16.msra.mxu0 %v1476
      %1745 = vmatprep.subr.bf16.mxu0 0
      %1746 = vmatpush1.bf16.msra.mxu0 %v1477
      %1747 = vmatprep.subr.bf16.mxu0 0
      %1748 = vmatpush1.bf16.msra.mxu0 %v1478
      %1749 = vmatprep.subr.bf16.mxu0 0
      %1750 = vmatpush1.bf16.msra.mxu0 %v1479
      %1751 = vmatprep.subr.bf16.mxu0 0
      %1752 = vmatpush1.bf16.msra.mxu0 %v1480
      %1753 = vmatprep.mubr.bf16.mxu0 %v794
      %1754 = vmatmul.mubr.bf16.gmra.mrb[0].mxu0 %v793
      %v1755 = vpop.f32.mrb[0].mxu0
      %v1756 = vadd.f32 0.0, %v1755
      %v1757 = vpop.f32.mrb[0].mxu0
      %v1758 = vpop.f32.mrb[0].mxu0
      %v1759 = vadd.f32 0.0, %v1758
      %v1760 = vpop.f32.mrb[0].mxu0
      %1761 = vmatprep.mubr.bf16.mxu0 %v810
      %1762 = vmatmul.mubr.bf16.gmra.mrb[0].mxu0 %v809
      %v1763 = vpop.f32.mrb[0].mxu0
      %v1764 = vadd.f32 0.0, %v1763
      %v1765 = vpop.f32.mrb[0].mxu0
      %v1766 = vpop.f32.mrb[0].mxu0
      %v1767 = vadd.f32 0.0, %v1766
      %v1768 = vpop.f32.mrb[0].mxu0
      %1769 = vmatprep.mubr.bf16.mxu0 %v826
      %1770 = vmatmul.mubr.bf16.gmra.mrb[0].mxu0 %v825
      %v1771 = vpop.f32.mrb[0].mxu0
      %v1772 = vadd.f32 0.0, %v1771
      %v1773 = vpop.f32.mrb[0].mxu0
      %v1774 = vpop.f32.mrb[0].mxu0
      %v1775 = vadd.f32 0.0, %v1774
      %v1776 = vpop.f32.mrb[0].mxu0
      %1777 = vmatprep.mubr.bf16.mxu0 %v842
      %1778 = vmatmul.mubr.bf16.gmra.mrb[0].mxu0 %v841
      %v1779 = vpop.f32.mrb[0].mxu0
      %v1780 = vadd.f32 0.0, %v1779
      %v1781 = vpop.f32.mrb[0].mxu0
      %v1782 = vpop.f32.mrb[0].mxu0
      %v1783 = vadd.f32 0.0, %v1782
      %v1784 = vpop.f32.mrb[0].mxu0
      %1785 = vmatprep.mubr.bf16.mxu0 %v858
      %1786 = vmatmul.mubr.bf16.gmra.mrb[0].mxu0 %v857
      %v1787 = vpop.f32.mrb[0].mxu0
      %v1788 = vadd.f32 0.0, %v1787
      %v1789 = vpop.f32.mrb[0].mxu0
      %v1790 = vpop.f32.mrb[0].mxu0
      %v1791 = vpop.f32.mrb[0].mxu0
      %1792 = vdwg.mxu0
      %1793 = vmatprep.subr.bf16.mxu0 0
      %1794 = vmatpush1.bf16.msra.mxu0 %v1481
      %1795 = vmatprep.subr.bf16.mxu0 0
      %1796 = vmatpush1.bf16.msra.mxu0 %v1482
      %1797 = vmatprep.subr.bf16.mxu0 0
      %1798 = vmatpush1.bf16.msra.mxu0 %v1483
      %1799 = vmatprep.subr.bf16.mxu0 0
      %1800 = vmatpush1.bf16.msra.mxu0 %v1484
      %1801 = vmatprep.subr.bf16.mxu0 0
      %1802 = vmatpush1.bf16.msra.mxu0 %v1485
      %1803 = vmatprep.subr.bf16.mxu0 0
      %1804 = vmatpush1.bf16.msra.mxu0 %v1486
      %1805 = vmatprep.subr.bf16.mxu0 0
      %1806 = vmatpush1.bf16.msra.mxu0 %v1487
      %1807 = vmatprep.subr.bf16.mxu0 0
      %1808 = vmatpush1.bf16.msra.mxu0 %v1488
      %1809 = vmatprep.subr.bf16.mxu0 0
      %1810 = vmatpush1.bf16.msra.mxu0 %v1489
      %1811 = vmatprep.subr.bf16.mxu0 0
      %1812 = vmatpush1.bf16.msra.mxu0 %v1490
      %1813 = vmatprep.subr.bf16.mxu0 0
      %1814 = vmatpush1.bf16.msra.mxu0 %v1491
      %1815 = vmatprep.subr.bf16.mxu0 0
      %1816 = vmatpush1.bf16.msra.mxu0 %v1492
      %1817 = vmatprep.subr.bf16.mxu0 0
      %1818 = vmatpush1.bf16.msra.mxu0 %v1493
      %1819 = vmatprep.subr.bf16.mxu0 0
      %1820 = vmatpush1.bf16.msra.mxu0 %v1494
      %1821 = vmatprep.subr.bf16.mxu0 0
      %1822 = vmatpush1.bf16.msra.mxu0 %v1495
      %1823 = vmatprep.subr.bf16.mxu0 0
      %1824 = vmatpush1.bf16.msra.mxu0 %v1496
      %1825 = vmatprep.mubr.bf16.mxu0 %v796
      %1826 = vmatmul.mubr.bf16.gmra.mrb[0].mxu0 %v795
      %v1827 = vpop.f32.mrb[0].mxu0
      %v1828 = vadd.f32 %v1756, %v1827
      %v1829 = vpop.f32.mrb[0].mxu0
      %v1830 = vpop.f32.mrb[0].mxu0
      %v1831 = vadd.f32 %v1759, %v1830
      %v1832 = vpop.f32.mrb[0].mxu0
      %1833 = vmatprep.mubr.bf16.mxu0 %v812
      %1834 = vmatmul.mubr.bf16.gmra.mrb[0].mxu0 %v811
      %v1835 = vpop.f32.mrb[0].mxu0
      %v1836 = vadd.f32 %v1764, %v1835
      %v1837 = vpop.f32.mrb[0].mxu0
      %v1838 = vpop.f32.mrb[0].mxu0
      %v1839 = vadd.f32 %v1767, %v1838
      %v1840 = vpop.f32.mrb[0].mxu0
      %1841 = vmatprep.mubr.bf16.mxu0 %v828
      %1842 = vmatmul.mubr.bf16.gmra.mrb[0].mxu0 %v827
      %v1843 = vpop.f32.mrb[0].mxu0
      %v1844 = vadd.f32 %v1772, %v1843
      %v1845 = vpop.f32.mrb[0].mxu0
      %v1846 = vpop.f32.mrb[0].mxu0
      %v1847 = vadd.f32 %v1775, %v1846
      %v1848 = vpop.f32.mrb[0].mxu0
      %1849 = vmatprep.mubr.bf16.mxu0 %v844
      %1850 = vmatmul.mubr.bf16.gmra.mrb[0].mxu0 %v843
      %v1851 = vpop.f32.mrb[0].mxu0
      %v1852 = vadd.f32 %v1780, %v1851
      %v1853 = vpop.f32.mrb[0].mxu0
      %v1854 = vpop.f32.mrb[0].mxu0
      %v1855 = vadd.f32 %v1783, %v1854
      %v1856 = vpop.f32.mrb[0].mxu0
      %1857 = vmatprep.mubr.bf16.mxu0 %v860
      %1858 = vmatmul.mubr.bf16.gmra.mrb[0].mxu0 %v859
      %v1859 = vpop.f32.mrb[0].mxu0
      %v1860 = vadd.f32 %v1788, %v1859
      %v1861 = vpop.f32.mrb[0].mxu0
      %v1862 = vpop.f32.mrb[0].mxu0
      %v1863 = vpop.f32.mrb[0].mxu0
      %1864 = vdwg.mxu0
      %1865 = vmatprep.subr.bf16.mxu0 0
      %1866 = vmatpush1.bf16.msra.mxu0 %v1497
      %1867 = vmatprep.subr.bf16.mxu0 0
      %1868 = vmatpush1.bf16.msra.mxu0 %v1498
      %1869 = vmatprep.subr.bf16.mxu0 0
      %1870 = vmatpush1.bf16.msra.mxu0 %v1499
      %1871 = vmatprep.subr.bf16.mxu0 0
      %1872 = vmatpush1.bf16.msra.mxu0 %v1500
      %1873 = vmatprep.subr.bf16.mxu0 0
      %1874 = vmatpush1.bf16.msra.mxu0 %v1501
      %1875 = vmatprep.subr.bf16.mxu0 0
      %1876 = vmatpush1.bf16.msra.mxu0 %v1502
      %1877 = vmatprep.subr.bf16.mxu0 0
      %1878 = vmatpush1.bf16.msra.mxu0 %v1503
      %1879 = vmatprep.subr.bf16.mxu0 0
      %1880 = vmatpush1.bf16.msra.mxu0 %v1504
      %1881 = vmatprep.subr.bf16.mxu0 0
      %1882 = vmatpush1.bf16.msra.mxu0 %v1505
      %1883 = vmatprep.subr.bf16.mxu0 0
      %1884 = vmatpush1.bf16.msra.mxu0 %v1506
      %1885 = vmatprep.subr.bf16.mxu0 0
      %1886 = vmatpush1.bf16.msra.mxu0 %v1507
      %1887 = vmatprep.subr.bf16.mxu0 0
      %1888 = vmatpush1.bf16.msra.mxu0 %v1508
      %1889 = vmatprep.subr.bf16.mxu0 0
      %1890 = vmatpush1.bf16.msra.mxu0 %v1509
      %1891 = vmatprep.subr.bf16.mxu0 0
      %1892 = vmatpush1.bf16.msra.mxu0 %v1510
      %1893 = vmatprep.subr.bf16.mxu0 0
      %1894 = vmatpush1.bf16.msra.mxu0 %v1511
      %1895 = vmatprep.subr.bf16.mxu0 0
      %1896 = vmatpush1.bf16.msra.mxu0 %v1512
      %1897 = vmatprep.mubr.bf16.mxu0 %v798
      %1898 = vmatmul.mubr.bf16.gmra.mrb[0].mxu0 %v797
      %v1899 = vpop.f32.mrb[0].mxu0
      %v1900 = vadd.f32 %v1828, %v1899
      %v1901 = vpop.f32.mrb[0].mxu0
      %v1902 = vpop.f32.mrb[0].mxu0
      %v1903 = vadd.f32 %v1831, %v1902
      %v1904 = vpop.f32.mrb[0].mxu0
      %1905 = vmatprep.mubr.bf16.mxu0 %v814
      %1906 = vmatmul.mubr.bf16.gmra.mrb[0].mxu0 %v813
      %v1907 = vpop.f32.mrb[0].mxu0
      %v1908 = vadd.f32 %v1836, %v1907
      %v1909 = vpop.f32.mrb[0].mxu0
      %v1910 = vpop.f32.mrb[0].mxu0
      %v1911 = vadd.f32 %v1839, %v1910
      %v1912 = vpop.f32.mrb[0].mxu0
      %1913 = vmatprep.mubr.bf16.mxu0 %v830
      %1914 = vmatmul.mubr.bf16.gmra.mrb[0].mxu0 %v829
      %v1915 = vpop.f32.mrb[0].mxu0
      %v1916 = vadd.f32 %v1844, %v1915
      %v1917 = vpop.f32.mrb[0].mxu0
      %v1918 = vpop.f32.mrb[0].mxu0
      %v1919 = vadd.f32 %v1847, %v1918
      %v1920 = vpop.f32.mrb[0].mxu0
      %1921 = vmatprep.mubr.bf16.mxu0 %v846
      %1922 = vmatmul.mubr.bf16.gmra.mrb[0].mxu0 %v845
      %v1923 = vpop.f32.mrb[0].mxu0
      %v1924 = vadd.f32 %v1852, %v1923
      %v1925 = vpop.f32.mrb[0].mxu0
      %v1926 = vpop.f32.mrb[0].mxu0
      %v1927 = vadd.f32 %v1855, %v1926
      %v1928 = vpop.f32.mrb[0].mxu0
      %1929 = vmatprep.mubr.bf16.mxu0 %v862
      %1930 = vmatmul.mubr.bf16.gmra.mrb[0].mxu0 %v861
      %v1931 = vpop.f32.mrb[0].mxu0
      %v1932 = vadd.f32 %v1860, %v1931
      %v1933 = vpop.f32.mrb[0].mxu0
      %v1934 = vpop.f32.mrb[0].mxu0
      %v1935 = vpop.f32.mrb[0].mxu0
      %1936 = vdwg.mxu0
      %1937 = vmatprep.subr.bf16.mxu0 0
      %1938 = vmatpush1.bf16.msra.mxu0 %v1513
      %1939 = vmatprep.subr.bf16.mxu0 0
      %1940 = vmatpush1.bf16.msra.mxu0 %v1514
      %1941 = vmatprep.subr.bf16.mxu0 0
      %1942 = vmatpush1.bf16.msra.mxu0 %v1515
      %1943 = vmatprep.subr.bf16.mxu0 0
      %1944 = vmatpush1.bf16.msra.mxu0 %v1516
      %1945 = vmatprep.subr.bf16.mxu0 0
      %1946 = vmatpush1.bf16.msra.mxu0 %v1517
      %1947 = vmatprep.subr.bf16.mxu0 0
      %1948 = vmatpush1.bf16.msra.mxu0 %v1518
      %1949 = vmatprep.subr.bf16.mxu0 0
      %1950 = vmatpush1.bf16.msra.mxu0 %v1519
      %1951 = vmatprep.subr.bf16.mxu0 0
      %1952 = vmatpush1.bf16.msra.mxu0 %v1520
      %1953 = vmatprep.subr.bf16.mxu0 0
      %1954 = vmatpush1.bf16.msra.mxu0 %v1521
      %1955 = vmatprep.subr.bf16.mxu0 0
      %1956 = vmatpush1.bf16.msra.mxu0 %v1522
      %1957 = vmatprep.subr.bf16.mxu0 0
      %1958 = vmatpush1.bf16.msra.mxu0 %v1523
      %1959 = vmatprep.subr.bf16.mxu0 0
      %1960 = vmatpush1.bf16.msra.mxu0 %v1524
      %1961 = vmatprep.subr.bf16.mxu0 0
      %1962 = vmatpush1.bf16.msra.mxu0 %v1525
      %1963 = vmatprep.subr.bf16.mxu0 0
      %1964 = vmatpush1.bf16.msra.mxu0 %v1526
      %1965 = vmatprep.subr.bf16.mxu0 0
      %1966 = vmatpush1.bf16.msra.mxu0 %v1527
      %1967 = vmatprep.subr.bf16.mxu0 0
      %1968 = vmatpush1.bf16.msra.mxu0 %v1528
      %1969 = vmatprep.mubr.bf16.mxu0 %v800
      %1970 = vmatmul.mubr.bf16.gmra.mrb[0].mxu0 %v799
      %v1971 = vpop.f32.mrb[0].mxu0
      %v1972 = vadd.f32 %v1900, %v1971
      %v1973 = vpop.f32.mrb[0].mxu0
      %v1974 = vpop.f32.mrb[0].mxu0
      %v1975 = vadd.f32 %v1903, %v1974
      %v1976 = vpop.f32.mrb[0].mxu0
      %1977 = vmatprep.mubr.bf16.mxu0 %v816
      %1978 = vmatmul.mubr.bf16.gmra.mrb[0].mxu0 %v815
      %v1979 = vpop.f32.mrb[0].mxu0
      %v1980 = vadd.f32 %v1908, %v1979
      %v1981 = vpop.f32.mrb[0].mxu0
      %v1982 = vpop.f32.mrb[0].mxu0
      %v1983 = vadd.f32 %v1911, %v1982
      %v1984 = vpop.f32.mrb[0].mxu0
      %1985 = vmatprep.mubr.bf16.mxu0 %v832
      %1986 = vmatmul.mubr.bf16.gmra.mrb[0].mxu0 %v831
      %v1987 = vpop.f32.mrb[0].mxu0
      %v1988 = vadd.f32 %v1916, %v1987
      %v1989 = vpop.f32.mrb[0].mxu0
      %v1990 = vpop.f32.mrb[0].mxu0
      %v1991 = vadd.f32 %v1919, %v1990
      %v1992 = vpop.f32.mrb[0].mxu0
      %1993 = vmatprep.mubr.bf16.mxu0 %v848
      %1994 = vmatmul.mubr.bf16.gmra.mrb[0].mxu0 %v847
      %v1995 = vpop.f32.mrb[0].mxu0
      %v1996 = vadd.f32 %v1924, %v1995
      %v1997 = vpop.f32.mrb[0].mxu0
      %v1998 = vpop.f32.mrb[0].mxu0
      %v1999 = vadd.f32 %v1927, %v1998
      %v2000 = vpop.f32.mrb[0].mxu0
      %2001 = vmatprep.mubr.bf16.mxu0 %v864
      %2002 = vmatmul.mubr.bf16.gmra.mrb[0].mxu0 %v863
      %v2003 = vpop.f32.mrb[0].mxu0
      %v2004 = vadd.f32 %v1932, %v2003
      %v2005 = vpop.f32.mrb[0].mxu0
      %v2006 = vpop.f32.mrb[0].mxu0
      %v2007 = vpop.f32.mrb[0].mxu0
      %2008 = vdwg.mxu0
      %2009 = vmatprep.subr.bf16.mxu0 0
      %2010 = vmatpush1.bf16.msra.mxu0 %v1529
      %2011 = vmatprep.subr.bf16.mxu0 0
      %2012 = vmatpush1.bf16.msra.mxu0 %v1530
      %2013 = vmatprep.subr.bf16.mxu0 0
      %2014 = vmatpush1.bf16.msra.mxu0 %v1531
      %2015 = vmatprep.subr.bf16.mxu0 0
      %2016 = vmatpush1.bf16.msra.mxu0 %v1532
      %2017 = vmatprep.subr.bf16.mxu0 0
      %2018 = vmatpush1.bf16.msra.mxu0 %v1533
      %2019 = vmatprep.subr.bf16.mxu0 0
      %2020 = vmatpush1.bf16.msra.mxu0 %v1534
      %2021 = vmatprep.subr.bf16.mxu0 0
      %2022 = vmatpush1.bf16.msra.mxu0 %v1535
      %2023 = vmatprep.subr.bf16.mxu0 0
      %2024 = vmatpush1.bf16.msra.mxu0 %v1536
      %2025 = vmatprep.subr.bf16.mxu0 0
      %2026 = vmatpush1.bf16.msra.mxu0 %v1537
      %2027 = vmatprep.subr.bf16.mxu0 0
      %2028 = vmatpush1.bf16.msra.mxu0 %v1538
      %2029 = vmatprep.subr.bf16.mxu0 0
      %2030 = vmatpush1.bf16.msra.mxu0 %v1539
      %2031 = vmatprep.subr.bf16.mxu0 0
      %2032 = vmatpush1.bf16.msra.mxu0 %v1540
      %2033 = vmatprep.subr.bf16.mxu0 0
      %2034 = vmatpush1.bf16.msra.mxu0 %v1541
      %2035 = vmatprep.subr.bf16.mxu0 0
      %2036 = vmatpush1.bf16.msra.mxu0 %v1542
      %2037 = vmatprep.subr.bf16.mxu0 0
      %2038 = vmatpush1.bf16.msra.mxu0 %v1543
      %2039 = vmatprep.subr.bf16.mxu0 0
      %2040 = vmatpush1.bf16.msra.mxu0 %v1544
      %2041 = vmatprep.mubr.bf16.mxu0 %v802
      %2042 = vmatmul.mubr.bf16.gmra.mrb[0].mxu0 %v801
      %v2043 = vpop.f32.mrb[0].mxu0
      %v2044 = vadd.f32 %v1972, %v2043
      %v2045 = vpop.f32.mrb[0].mxu0
      %v2046 = vpop.f32.mrb[0].mxu0
      %v2047 = vadd.f32 %v1975, %v2046
      %v2048 = vpop.f32.mrb[0].mxu0
      %2049 = vmatprep.mubr.bf16.mxu0 %v818
      %2050 = vmatmul.mubr.bf16.gmra.mrb[0].mxu0 %v817
      %v2051 = vpop.f32.mrb[0].mxu0
      %v2052 = vadd.f32 %v1980, %v2051
      %v2053 = vpop.f32.mrb[0].mxu0
      %v2054 = vpop.f32.mrb[0].mxu0
      %v2055 = vadd.f32 %v1983, %v2054
      %v2056 = vpop.f32.mrb[0].mxu0
      %2057 = vmatprep.mubr.bf16.mxu0 %v834
      %2058 = vmatmul.mubr.bf16.gmra.mrb[0].mxu0 %v833
      %v2059 = vpop.f32.mrb[0].mxu0
      %v2060 = vadd.f32 %v1988, %v2059
      %v2061 = vpop.f32.mrb[0].mxu0
      %v2062 = vpop.f32.mrb[0].mxu0
      %v2063 = vadd.f32 %v1991, %v2062
      %v2064 = vpop.f32.mrb[0].mxu0
      %2065 = vmatprep.mubr.bf16.mxu0 %v850
      %2066 = vmatmul.mubr.bf16.gmra.mrb[0].mxu0 %v849
      %v2067 = vpop.f32.mrb[0].mxu0
      %v2068 = vadd.f32 %v1996, %v2067
      %v2069 = vpop.f32.mrb[0].mxu0
      %v2070 = vpop.f32.mrb[0].mxu0
      %v2071 = vadd.f32 %v1999, %v2070
      %v2072 = vpop.f32.mrb[0].mxu0
      %2073 = vmatprep.mubr.bf16.mxu0 %v866
      %2074 = vmatmul.mubr.bf16.gmra.mrb[0].mxu0 %v865
      %v2075 = vpop.f32.mrb[0].mxu0
      %v2076 = vadd.f32 %v2004, %v2075
      %v2077 = vpop.f32.mrb[0].mxu0
      %v2078 = vpop.f32.mrb[0].mxu0
      %v2079 = vpop.f32.mrb[0].mxu0
      %2080 = vdwg.mxu0
      %2081 = vmatprep.subr.bf16.mxu0 0
      %2082 = vmatpush1.bf16.msra.mxu0 %v1545
      %2083 = vmatprep.subr.bf16.mxu0 0
      %2084 = vmatpush1.bf16.msra.mxu0 %v1546
      %2085 = vmatprep.subr.bf16.mxu0 0
      %2086 = vmatpush1.bf16.msra.mxu0 %v1547
      %2087 = vmatprep.subr.bf16.mxu0 0
      %2088 = vmatpush1.bf16.msra.mxu0 %v1548
      %2089 = vmatprep.subr.bf16.mxu0 0
      %2090 = vmatpush1.bf16.msra.mxu0 %v1549
      %2091 = vmatprep.subr.bf16.mxu0 0
      %2092 = vmatpush1.bf16.msra.mxu0 %v1550
      %2093 = vmatprep.subr.bf16.mxu0 0
      %2094 = vmatpush1.bf16.msra.mxu0 %v1551
      %2095 = vmatprep.subr.bf16.mxu0 0
      %2096 = vmatpush1.bf16.msra.mxu0 %v1552
      %2097 = vmatprep.subr.bf16.mxu0 0
      %2098 = vmatpush1.bf16.msra.mxu0 %v1553
      %2099 = vmatprep.subr.bf16.mxu0 0
      %2100 = vmatpush1.bf16.msra.mxu0 %v1554
      %2101 = vmatprep.subr.bf16.mxu0 0
      %2102 = vmatpush1.bf16.msra.mxu0 %v1555
      %2103 = vmatprep.subr.bf16.mxu0 0
      %2104 = vmatpush1.bf16.msra.mxu0 %v1556
      %2105 = vmatprep.subr.bf16.mxu0 0
      %2106 = vmatpush1.bf16.msra.mxu0 %v1557
      %2107 = vmatprep.subr.bf16.mxu0 0
      %2108 = vmatpush1.bf16.msra.mxu0 %v1558
      %2109 = vmatprep.subr.bf16.mxu0 0
      %2110 = vmatpush1.bf16.msra.mxu0 %v1559
      %2111 = vmatprep.subr.bf16.mxu0 0
      %2112 = vmatpush1.bf16.msra.mxu0 %v1560
      %2113 = vmatprep.mubr.bf16.mxu0 %v804
      %2114 = vmatmul.mubr.bf16.gmra.mrb[0].mxu0 %v803
      %v2115 = vpop.f32.mrb[0].mxu0
      %v2116 = vadd.f32 %v2044, %v2115
      %v2117 = vpop.f32.mrb[0].mxu0
      %v2118 = vpop.f32.mrb[0].mxu0
      %v2119 = vadd.f32 %v2047, %v2118
      %v2120 = vpop.f32.mrb[0].mxu0
      %2121 = vmatprep.mubr.bf16.mxu0 %v820
      %2122 = vmatmul.mubr.bf16.gmra.mrb[0].mxu0 %v819
      %v2123 = vpop.f32.mrb[0].mxu0
      %v2124 = vadd.f32 %v2052, %v2123
      %v2125 = vpop.f32.mrb[0].mxu0
      %v2126 = vpop.f32.mrb[0].mxu0
      %v2127 = vadd.f32 %v2055, %v2126
      %v2128 = vpop.f32.mrb[0].mxu0
      %2129 = vmatprep.mubr.bf16.mxu0 %v836
      %2130 = vmatmul.mubr.bf16.gmra.mrb[0].mxu0 %v835
      %v2131 = vpop.f32.mrb[0].mxu0
      %v2132 = vadd.f32 %v2060, %v2131
      %v2133 = vpop.f32.mrb[0].mxu0
      %v2134 = vpop.f32.mrb[0].mxu0
      %v2135 = vadd.f32 %v2063, %v2134
      %v2136 = vpop.f32.mrb[0].mxu0
      %2137 = vmatprep.mubr.bf16.mxu0 %v852
      %2138 = vmatmul.mubr.bf16.gmra.mrb[0].mxu0 %v851
      %v2139 = vpop.f32.mrb[0].mxu0
      %v2140 = vadd.f32 %v2068, %v2139
      %v2141 = vpop.f32.mrb[0].mxu0
      %v2142 = vpop.f32.mrb[0].mxu0
      %v2143 = vadd.f32 %v2071, %v2142
      %v2144 = vpop.f32.mrb[0].mxu0
      %2145 = vmatprep.mubr.bf16.mxu0 %v868
      %2146 = vmatmul.mubr.bf16.gmra.mrb[0].mxu0 %v867
      %v2147 = vpop.f32.mrb[0].mxu0
      %v2148 = vadd.f32 %v2076, %v2147
      %v2149 = vpop.f32.mrb[0].mxu0
      %v2150 = vpop.f32.mrb[0].mxu0
      %v2151 = vpop.f32.mrb[0].mxu0
      %2152 = vdwg.mxu0
      %2153 = vmatprep.subr.bf16.mxu0 0
      %2154 = vmatpush1.bf16.msra.mxu0 %v1561
      %2155 = vmatprep.subr.bf16.mxu0 0
      %2156 = vmatpush1.bf16.msra.mxu0 %v1562
      %2157 = vmatprep.subr.bf16.mxu0 0
      %2158 = vmatpush1.bf16.msra.mxu0 %v1563
      %2159 = vmatprep.subr.bf16.mxu0 0
      %2160 = vmatpush1.bf16.msra.mxu0 %v1564
      %2161 = vmatprep.subr.bf16.mxu0 0
      %2162 = vmatpush1.bf16.msra.mxu0 %v1565
      %2163 = vmatprep.subr.bf16.mxu0 0
      %2164 = vmatpush1.bf16.msra.mxu0 %v1566
      %2165 = vmatprep.subr.bf16.mxu0 0
      %2166 = vmatpush1.bf16.msra.mxu0 %v1567
      %2167 = vmatprep.subr.bf16.mxu0 0
      %2168 = vmatpush1.bf16.msra.mxu0 %v1568
      %2169 = vmatprep.subr.bf16.mxu0 0
      %2170 = vmatpush1.bf16.msra.mxu0 %v1569
      %2171 = vmatprep.subr.bf16.mxu0 0
      %2172 = vmatpush1.bf16.msra.mxu0 %v1570
      %2173 = vmatprep.subr.bf16.mxu0 0
      %2174 = vmatpush1.bf16.msra.mxu0 %v1571
      %2175 = vmatprep.subr.bf16.mxu0 0
      %2176 = vmatpush1.bf16.msra.mxu0 %v1572
      %2177 = vmatprep.subr.bf16.mxu0 0
      %2178 = vmatpush1.bf16.msra.mxu0 %v1573
      %2179 = vmatprep.subr.bf16.mxu0 0
      %2180 = vmatpush1.bf16.msra.mxu0 %v1574
      %2181 = vmatprep.subr.bf16.mxu0 0
      %2182 = vmatpush1.bf16.msra.mxu0 %v1575
      %2183 = vmatprep.subr.bf16.mxu0 0
      %2184 = vmatpush1.bf16.msra.mxu0 %v1576
      %2185 = vmatprep.mubr.bf16.mxu0 %v806
      %2186 = vmatmul.mubr.bf16.gmra.mrb[0].mxu0 %v805
      %v2187 = vpop.f32.mrb[0].mxu0
      %v2188 = vadd.f32 %v2116, %v2187
      %v2189 = vpop.f32.mrb[0].mxu0
      %v2190 = vpop.f32.mrb[0].mxu0
      %v2191 = vadd.f32 %v2119, %v2190
      %v2192 = vpop.f32.mrb[0].mxu0
      %2193 = vmatprep.mubr.bf16.mxu0 %v822
      %2194 = vmatmul.mubr.bf16.gmra.mrb[0].mxu0 %v821
      %v2195 = vpop.f32.mrb[0].mxu0
      %v2196 = vadd.f32 %v2124, %v2195
      %v2197 = vpop.f32.mrb[0].mxu0
      %v2198 = vpop.f32.mrb[0].mxu0
      %v2199 = vadd.f32 %v2127, %v2198
      %v2200 = vpop.f32.mrb[0].mxu0
      %2201 = vmatprep.mubr.bf16.mxu0 %v838
      %2202 = vmatmul.mubr.bf16.gmra.mrb[0].mxu0 %v837
      %v2203 = vpop.f32.mrb[0].mxu0
      %v2204 = vadd.f32 %v2132, %v2203
      %v2205 = vpop.f32.mrb[0].mxu0
      %v2206 = vpop.f32.mrb[0].mxu0
      %v2207 = vadd.f32 %v2135, %v2206
      %v2208 = vpop.f32.mrb[0].mxu0
      %2209 = vmatprep.mubr.bf16.mxu0 %v854
      %2210 = vmatmul.mubr.bf16.gmra.mrb[0].mxu0 %v853
      %v2211 = vpop.f32.mrb[0].mxu0
      %v2212 = vadd.f32 %v2140, %v2211
      %v2213 = vpop.f32.mrb[0].mxu0
      %v2214 = vpop.f32.mrb[0].mxu0
      %v2215 = vadd.f32 %v2143, %v2214
      %v2216 = vpop.f32.mrb[0].mxu0
      %2217 = vmatprep.mubr.bf16.mxu0 %v870
      %2218 = vmatmul.mubr.bf16.gmra.mrb[0].mxu0 %v869
      %v2219 = vpop.f32.mrb[0].mxu0
      %v2220 = vadd.f32 %v2148, %v2219
      %v2221 = vpop.f32.mrb[0].mxu0
      %v2222 = vpop.f32.mrb[0].mxu0
      %v2223 = vpop.f32.mrb[0].mxu0
      %2224 = vdwg.mxu0
      %2225 = vmatprep.subr.bf16.mxu0 0
      %2226 = vmatpush1.bf16.msra.mxu0 %v1577
      %2227 = vmatprep.subr.bf16.mxu0 0
      %2228 = vmatpush1.bf16.msra.mxu0 %v1578
      %2229 = vmatprep.subr.bf16.mxu0 0
      %2230 = vmatpush1.bf16.msra.mxu0 %v1579
      %2231 = vmatprep.subr.bf16.mxu0 0
      %2232 = vmatpush1.bf16.msra.mxu0 %v1580
      %2233 = vmatprep.subr.bf16.mxu0 0
      %2234 = vmatpush1.bf16.msra.mxu0 %v1581
      %2235 = vmatprep.subr.bf16.mxu0 0
      %2236 = vmatpush1.bf16.msra.mxu0 %v1582
      %2237 = vmatprep.subr.bf16.mxu0 0
      %2238 = vmatpush1.bf16.msra.mxu0 %v1583
      %2239 = vmatprep.subr.bf16.mxu0 0
      %2240 = vmatpush1.bf16.msra.mxu0 %v1584
      %2241 = vmatprep.subr.bf16.mxu0 0
      %2242 = vmatpush1.bf16.msra.mxu0 %v1585
      %2243 = vmatprep.subr.bf16.mxu0 0
      %2244 = vmatpush1.bf16.msra.mxu0 %v1586
      %2245 = vmatprep.subr.bf16.mxu0 0
      %2246 = vmatpush1.bf16.msra.mxu0 %v1587
      %2247 = vmatprep.subr.bf16.mxu0 0
      %2248 = vmatpush1.bf16.msra.mxu0 %v1588
      %2249 = vmatprep.subr.bf16.mxu0 0
      %2250 = vmatpush1.bf16.msra.mxu0 %v1589
      %2251 = vmatprep.subr.bf16.mxu0 0
      %2252 = vmatpush1.bf16.msra.mxu0 %v1590
      %2253 = vmatprep.subr.bf16.mxu0 0
      %2254 = vmatpush1.bf16.msra.mxu0 %v1591
      %2255 = vmatprep.subr.bf16.mxu0 0
      %2256 = vmatpush1.bf16.msra.mxu0 %v1592
      %2257 = vmatprep.mubr.bf16.mxu0 %v808
      %2258 = vmatmul.mubr.bf16.gmra.mrb[0].mxu0 %v807
      %v2259 = vpop.f32.mrb[0].mxu0
      %v2260 = vadd.f32 %v2188, %v2259
      %v2261 = vpop.f32.mrb[0].mxu0
      %v2262 = vpop.f32.mrb[0].mxu0
      %v2263 = vadd.f32 %v2191, %v2262
      %v2264 = vpop.f32.mrb[0].mxu0
      %2265 = vmatprep.mubr.bf16.mxu0 %v824
      %2266 = vmatmul.mubr.bf16.gmra.mrb[0].mxu0 %v823
      %v2267 = vpop.f32.mrb[0].mxu0
      %v2268 = vadd.f32 %v2196, %v2267
      %v2269 = vpop.f32.mrb[0].mxu0
      %v2270 = vpop.f32.mrb[0].mxu0
      %v2271 = vadd.f32 %v2199, %v2270
      %v2272 = vpop.f32.mrb[0].mxu0
      %2273 = vmatprep.mubr.bf16.mxu0 %v840
      %2274 = vmatmul.mubr.bf16.gmra.mrb[0].mxu0 %v839
      %v2275 = vpop.f32.mrb[0].mxu0
      %v2276 = vadd.f32 %v2204, %v2275
      %v2277 = vpop.f32.mrb[0].mxu0
      %v2278 = vpop.f32.mrb[0].mxu0
      %v2279 = vadd.f32 %v2207, %v2278
      %v2280 = vpop.f32.mrb[0].mxu0
      %2281 = vmatprep.mubr.bf16.mxu0 %v856
      %2282 = vmatmul.mubr.bf16.gmra.mrb[0].mxu0 %v855
      %v2283 = vpop.f32.mrb[0].mxu0
      %v2284 = vadd.f32 %v2212, %v2283
      %v2285 = vpop.f32.mrb[0].mxu0
      %v2286 = vpop.f32.mrb[0].mxu0
      %v2287 = vadd.f32 %v2215, %v2286
      %v2288 = vpop.f32.mrb[0].mxu0
      %2289 = vmatprep.mubr.bf16.mxu0 %v872
      %2290 = vmatmul.mubr.bf16.gmra.mrb[0].mxu0 %v871
      %v2291 = vpop.f32.mrb[0].mxu0
      %v2292 = vadd.f32 %v2220, %v2291
      %v2293 = vpop.f32.mrb[0].mxu0
      %v2294 = vpop.f32.mrb[0].mxu0
      %v2295 = vpop.f32.mrb[0].mxu0
      %2296 = vdwg.mxu0
      %v2297 = vld [vmem:[%s234] sm:$0xff]
      %v2298 = vld [vmem:[%s234 + $0x8] sm:$0xff]
      %v2299 = vld [vmem:[%s234 + $0x10] sm:$0xff]
      %v2300 = vld [vmem:[%s234 + $0x18] sm:$0xff]
      %v2301 = vld [vmem:[%s234 + $0x20] sm:$0xff]
      %v2302 = vld [vmem:[%s234 + $0x28] sm:$0xff]
      %v2303 = vld [vmem:[%s234 + $0x30] sm:$0xff]
      %v2304 = vld [vmem:[%s234 + $0x38] sm:$0xff]
      %v2305 = vld [vmem:[%s234 + $0x40] sm:$0xff]
      %v2306 = vmul.f32 %v2260, %v2297
      %v2307 = vmul.f32 %v2263, %v2298
      %v2308 = vmul.f32 %v2268, %v2299
      %v2309 = vmul.f32 %v2271, %v2300
      %v2310 = vmul.f32 %v2276, %v2301
      %v2311 = vmul.f32 %v2279, %v2302
      %v2312 = vmul.f32 %v2284, %v2303
      %v2313 = vmul.f32 %v2287, %v2304
      %v2314 = vmul.f32 %v2292, %v2305
      %v2315 = vld [vmem:[%s240] sm:$0xff]
      %v2316 = vld [vmem:[%s240 + $0x8] sm:$0xff]
      %v2317 = vld [vmem:[%s240 + $0x10] sm:$0xff]
      %v2318 = vld [vmem:[%s240 + $0x18] sm:$0xff]
      %v2319 = vld [vmem:[%s240 + $0x20] sm:$0xff]
      %v2320 = vld [vmem:[%s240 + $0x28] sm:$0xff]
      %v2321 = vld [vmem:[%s240 + $0x30] sm:$0xff]
      %v2322 = vld [vmem:[%s240 + $0x38] sm:$0xff]
      %v2323 = vld [vmem:[%s240 + $0x40] sm:$0xff]
      %v2324 = vadd.f32 %v2306, %v2315
      %v2325 = vadd.f32 %v2307, %v2316
      %v2326 = vadd.f32 %v2308, %v2317
      %v2327 = vadd.f32 %v2309, %v2318
      %v2328 = vadd.f32 %v2310, %v2319
      %v2329 = vadd.f32 %v2311, %v2320
      %v2330 = vadd.f32 %v2312, %v2321
      %v2331 = vadd.f32 %v2313, %v2322
      %v2332 = vadd.f32 %v2314, %v2323
      %2333 = vst [vmem:[%s246] sm:$0xff] %v2324
      %2334 = vst [vmem:[%s246 + $0x8] sm:$0xff] %v2325
      %2335 = vst [vmem:[%s246 + $0x10] sm:$0xff] %v2326
      %2336 = vst [vmem:[%s246 + $0x18] sm:$0xff] %v2327
      %2337 = vst [vmem:[%s246 + $0x20] sm:$0xff] %v2328
      %2338 = vst [vmem:[%s246 + $0x28] sm:$0xff] %v2329
      %2339 = vst [vmem:[%s246 + $0x30] sm:$0xff] %v2330
      %2340 = vst [vmem:[%s246 + $0x38] sm:$0xff] %v2331
      %2341 = vst [vmem:[%s246 + $0x40] sm:$0xff] %v2332
      %s2342 = smul.u32 9, %s15
      %p2343 = scmp.lt.s32.totalorder %s2342, 17
      %s2344 = scalar_select %p2343, %s2342, 17
      %s2345 = smul.addr %s2344, 8
      %s2346 = scalar_lea.vmem %s4, %s2345
      // Predicated region
      $region37: #{image_to_latent_forward.1} parent=35 // pred_check
        %p2347 = pneg %p132
      $region38: #{image_to_latent_forward.1} parent=35 // pred_check_branch
        %2349 = sbr.rel (%p2347) target = $region40
      $region39: #{image_to_latent_forward.1} parent=35 // pred_region
        %s2350 = smul.u32 9, %s15
      $region40: #{image_to_latent_forward.1} parent=35 // pred_fallthru
        _
    $region36: #{image_to_latent_forward.1} parent=5 // pred_fallthru
      _
    %p2351 = scmp.le.s32.totalorder 2, %s10
    // Predicated region
    $region41: #{image_to_latent_forward.1} parent=5 // pred_check
      %p2352 = pneg %p2351
    $region42: #{image_to_latent_forward.1} parent=5 // pred_check_branch
      %2354 = sbr.rel (%p2352) target = $region44
    $region43: #{image_to_latent_forward.1} parent=5 // pred_region
      %s2355 = ssub.s32 %s10, 2
      // Predicated region
      $region45: #{image_to_latent_forward.1} parent=43 // pred_check
        %p2356 = pneg %p138
      $region46: #{image_to_latent_forward.1} parent=43 // pred_check_branch
        %2358 = sbr.rel (%p2356) target = $region48
      $region47: #{image_to_latent_forward.1} parent=43 // pred_region
        %s2359 = smul.u32 9, %s16
        %p2360 = scmp.lt.s32.totalorder %s2359, 17
        %s2361 = scalar_select %p2360, %s2359, 17
        %s2362 = smul.addr %s2361, 8
        %s2363 = scalar_lea.vmem %s4, %s2362
      $region48: #{image_to_latent_forward.1} parent=43 // pred_fallthru
        _
    $region44: #{image_to_latent_forward.1} parent=5 // pred_fallthru
      _
  $region6: #{image_to_latent_forward.1} parent=0 // loop_footer
    %s14 = sadd.s32 1, %s10
  $region7: #{image_to_latent_forward.1} parent=0 // loop_footer_branch
    %9 = sbr.rel target = $region3
  $region8: #{image_to_latent_forward.1} parent=0 // loop_exit
    _

</llo_original>
